<compile_context>
chip_gen: v5e
topology: v5e:2x2
jax: 0.10.0
libtpu: 0.0.40
codegen_flags: <defaults>
</compile_context>

<pallas_src>
import functools

import jax
import jax.numpy as jnp
import numpy as np
from jax import lax
from jax.experimental import pallas as pl
from jax.experimental.pallas import tpu as pltpu


def _resnet_block_kernel(x_ref, m_ref, w1_ref, w2_ref, o_ref, *,
                         C, Wp, HW, LP, eps):
    # x_ref : (1, C, LP)  zero-embedded padded-grid image, flattened; the
    #                     interior (H*W) positions hold x, border/tail are 0.
    # m_ref : (5, LP)     float masks: interior, left col, right col, top row,
    #                     bottom row (all restricted to the valid grid).
    # w*_ref: (9*C, C, 1) weights laid out as [(kh*3+kw)*Cin + ci] -> (Cout, 1)
    # o_ref : (1, C, LP)  output in the same flat padded-grid layout.
    x0 = x_ref[0]                         # (C, LP) f32

    m_int = m_ref[0:1, :]                 # (1, LP)
    m_left = m_ref[1:2, :]
    m_right = m_ref[2:3, :]
    m_top = m_ref[3:4, :]
    m_bot = m_ref[4:5, :]

    inv_hw = 1.0 / float(HW)

    def shift(h, delta):
        # shifted[q] = h[q + delta]; only interior positions are consumed
        # downstream, so the circular wrap only touches don't-care lanes.
        if delta == 0:
            return h
        return pltpu.roll(h, shift=(-delta) % LP, axis=1)

    def reflect_fill(h):
        # Emulate ReflectionPad2d(1) on the padded grid: rewrite the 1-pixel
        # border ring from the interior (width first, then height so the
        # corners pick up the already width-reflected values).
        h = h + m_left * (shift(h, 2) - h)            # col 0     <- col 2
        h = h + m_right * (shift(h, -2) - h)          # col Wp-1  <- col Wp-3
        h = h + m_top * (shift(h, 2 * Wp) - h)        # row 0     <- row 2
        h = h + m_bot * (shift(h, -2 * Wp) - h)       # row Hp-1  <- row Hp-3
        return h

    def conv3x3(h, w_ref):
        # Valid at interior positions only.  VPU path: 9 lane shifts shared
        # across channels + C*C*9 rank-1 broadcast-FMAs on (C, LP).
        acc = jnp.zeros((C, LP), jnp.float32)
        for kh in range(3):
            for kw in range(3):
                tap = shift(h, (kh - 1) * Wp + (kw - 1))
                base = (kh * 3 + kw) * C
                for ci in range(C):
                    w_col = w_ref[base + ci]                 # (Cout, 1)
                    acc = acc + w_col * tap[ci:ci + 1, :]    # (Cout,1)*(1,LP)
        return acc

    def inst_norm(a):
        # InstanceNorm2d (affine=False, biased variance) over the interior.
        mean = jnp.sum(a * m_int, axis=1, keepdims=True) * inv_hw     # (C, 1)
        cent = a - mean
        var = jnp.sum(cent * cent * m_int, axis=1, keepdims=True) * inv_hw
        return cent * lax.rsqrt(var + eps)

    xr = reflect_fill(x0)                                   # ReflectionPad2d(1)
    h1 = jnp.maximum(inst_norm(conv3x3(xr, w1_ref)), 0.0)   # conv1 + IN + ReLU
    h1 = reflect_fill(h1)                                   # ReflectionPad2d(1)
    y2 = inst_norm(conv3x3(h1, w2_ref))                     # conv2 + IN
    o_ref[0] = (x0 + y2).astype(o_ref.dtype)                # residual


def _build_masks(H, W, LP):
    Hp, Wp = H + 2, W + 2
    L = Hp * Wp
    idx = np.arange(LP)
    row = idx // Wp
    col = idx % Wp
    valid = idx < L
    interior = valid & (row >= 1) & (row <= H) & (col >= 1) & (col <= W)
    left = valid & (col == 0)
    right = valid & (col == Wp - 1)
    top = valid & (row == 0)
    bot = valid & (row == Hp - 1)
    return jnp.asarray(
        np.stack([interior, left, right, top, bot]).astype(np.float32))


def resnet_block(x, w1, w2, *, eps=1e-5):
    """ResnetBlock forward: x + convblock(x).

    x : (N, C, H, W) float32
    w1, w2 : (C, C, 3, 3) float32 (PyTorch OIHW layout)
    Conv biases are intentionally not taken: they cancel under InstanceNorm.
    """
    N, C, H, W = x.shape
    assert w1.shape == (C, C, 3, 3) and w2.shape == (C, C, 3, 3)
    assert H >= 2 and W >= 2
    Hp, Wp = H + 2, W + 2
    L = Hp * Wp
    LP = ((L + 127) // 128) * 128          # lane-dense flat length

    # Zero-embed x into the padded grid, flatten spatial, pad tail to LP.
    xg = jnp.pad(x, ((0, 0), (0, 0), (1, 1), (1, 1)))
    xflat = jnp.pad(xg.reshape(N, C, L), ((0, 0), (0, 0), (0, LP - L)))

    masks = _build_masks(H, W, LP)                                  # (5, LP)
    # (Cout,Cin,KH,KW) -> (KH,KW,Cin,Cout) -> (9*Cin, Cout, 1)
    wk1 = jnp.transpose(w1, (2, 3, 1, 0)).reshape(9 * C, C, 1)
    wk2 = jnp.transpose(w2, (2, 3, 1, 0)).reshape(9 * C, C, 1)

    kernel = functools.partial(_resnet_block_kernel,
                               C=C, Wp=Wp, HW=H * W, LP=LP, eps=eps)

    out_flat = pl.pallas_call(
        kernel,
        out_shape=jax.ShapeDtypeStruct((N, C, LP), jnp.float32),
        grid_spec=pltpu.PrefetchScalarGridSpec(
            num_scalar_prefetch=0,
            grid=(N,),
            in_specs=[
                pl.BlockSpec((1, C, LP), lambda n: (n, 0, 0)),
                pl.BlockSpec((5, LP), lambda n: (0, 0)),
                pl.BlockSpec((9 * C, C, 1), lambda n: (0, 0, 0)),
                pl.BlockSpec((9 * C, C, 1), lambda n: (0, 0, 0)),
            ],
            out_specs=pl.BlockSpec((1, C, LP), lambda n: (n, 0, 0)),
        ),
        compiler_params=pltpu.CompilerParams(
            dimension_semantics=("parallel",)),
    )(xflat, masks, wk1, wk2)

    # Undo the flat padded-grid layout: keep only the valid interior pixels.
    out = out_flat[:, :, :L].reshape(N, C, Hp, Wp)[:, :, 1:-1, 1:-1]
    return out


def _reference(x, w1, b1, w2, b2, eps=1e-5):
    """Pure-JAX reference matching the PyTorch ResnetBlock (biases included)."""
    def stage(h, w, b):
        hp = jnp.pad(h, ((0, 0), (0, 0), (1, 1), (1, 1)), mode="reflect")
        y = lax.conv_general_dilated(
            hp, w, window_strides=(1, 1), padding="VALID",
            dimension_numbers=("NCHW", "OIHW", "NCHW"),
            precision=lax.Precision.HIGHEST) + b[None, :, None, None]
        mean = jnp.mean(y, axis=(2, 3), keepdims=True)
        var = jnp.mean((y - mean) ** 2, axis=(2, 3), keepdims=True)
        return (y - mean) * lax.rsqrt(var + eps)

    h = jnp.maximum(stage(x, w1, b1), 0.0)
    return x + stage(h, w2, b2)


if __name__ == "__main__":
    # ResnetBlock(dim=4), batch=2, 16x16 feature maps.
    N, dim, H, W = 2, 4, 16, 16

    key = jax.random.PRNGKey(0)
    kx, k1, k2, kb1, kb2 = jax.random.split(key, 5)
    x = jax.random.normal(kx, (N, dim, H, W), dtype=jnp.float32)

    fan_in = dim * 3 * 3
    bound = 1.0 / np.sqrt(fan_in)
    w1 = jax.random.uniform(k1, (dim, dim, 3, 3), jnp.float32,
                            minval=-bound, maxval=bound)
    w2 = jax.random.uniform(k2, (dim, dim, 3, 3), jnp.float32,
                            minval=-bound, maxval=bound)
    # Biases exist in the PyTorch module but cancel under InstanceNorm
    # (affine=False); they are used only by the reference.
    b1 = jax.random.uniform(kb1, (dim,), jnp.float32,
                            minval=-bound, maxval=bound)
    b2 = jax.random.uniform(kb2, (dim,), jnp.float32,
                            minval=-bound, maxval=bound)

    out = resnet_block(x, w1, w2)
    out = jax.block_until_ready(out)

    ref = _reference(x, w1, b1, w2, b2)
    np.testing.assert_allclose(np.asarray(out), np.asarray(ref),
                               atol=2e-3, rtol=2e-3)

    print("KERNEL_OK")
</pallas_src>

<mosaic_0001>
module attributes {stable_mosaic.version = 11 : i64} {
  func.func @_resnet_block_kernel(%arg0: i32, %arg1: memref<1x4x384xf32, #tpu.memory_space<vmem>>, %arg2: memref<5x384xf32, #tpu.memory_space<vmem>>, %arg3: memref<36x4x1xf32, #tpu.memory_space<vmem>>, %arg4: memref<36x4x1xf32, #tpu.memory_space<vmem>>, %arg5: memref<1x4x384xf32, #tpu.memory_space<vmem>>) attributes {dimension_semantics = [#tpu.dimension_semantics<parallel>], iteration_bounds = array<i64: 2>, scalar_prefetch = 0 : i64, scratch_operands = 0 : i64, tpu.core_type = #tpu.core_type<tc>, window_params = [{transform_indices = @transform_0, window_bounds = array<i64: 1, 4, 384>}, {pipeline_mode = #tpu.pipeline_mode<synchronous>, transform_indices = @transform_1, window_bounds = array<i64: 5, 384>}, {pipeline_mode = #tpu.pipeline_mode<synchronous>, transform_indices = @transform_2, window_bounds = array<i64: 36, 4, 1>}, {pipeline_mode = #tpu.pipeline_mode<synchronous>, transform_indices = @transform_3, window_bounds = array<i64: 36, 4, 1>}, {transform_indices = @transform_4, window_bounds = array<i64: 1, 4, 384>}]} {
    %c0 = arith.constant 0 : index
    %c0_0 = arith.constant 0 : index
    %c0_1 = arith.constant 0 : index
    %0 = vector.load %arg1[%c0, %c0_0, %c0_1] : memref<1x4x384xf32, #tpu.memory_space<vmem>>, vector<1x4x384xf32>
    %1 = vector.shape_cast %0 : vector<1x4x384xf32> to vector<4x384xf32>
    %c0_2 = arith.constant 0 : index
    %c0_3 = arith.constant 0 : index
    %2 = vector.load %arg2[%c0_2, %c0_3] : memref<5x384xf32, #tpu.memory_space<vmem>>, vector<1x384xf32>
    %c1 = arith.constant 1 : index
    %c0_4 = arith.constant 0 : index
    %3 = vector.load %arg2[%c1, %c0_4] : memref<5x384xf32, #tpu.memory_space<vmem>>, vector<1x384xf32>
    %c2 = arith.constant 2 : index
    %c0_5 = arith.constant 0 : index
    %4 = vector.load %arg2[%c2, %c0_5] : memref<5x384xf32, #tpu.memory_space<vmem>>, vector<1x384xf32>
    %c3 = arith.constant 3 : index
    %c0_6 = arith.constant 0 : index
    %5 = vector.load %arg2[%c3, %c0_6] : memref<5x384xf32, #tpu.memory_space<vmem>>, vector<1x384xf32>
    %c4 = arith.constant 4 : index
    %c0_7 = arith.constant 0 : index
    %6 = vector.load %arg2[%c4, %c0_7] : memref<5x384xf32, #tpu.memory_space<vmem>>, vector<1x384xf32>
    %c382_i32 = arith.constant 382 : i32
    %7 = tpu.dynamic_rotate %1 by %c382_i32 dim 1 : vector<4x384xf32>, i32 -> vector<4x384xf32>
    %8 = arith.subf %7, %1 : vector<4x384xf32>
    %9 = vector.broadcast %3 : vector<1x384xf32> to vector<4x384xf32>
    %10 = arith.mulf %9, %8 : vector<4x384xf32>
    %11 = arith.addf %1, %10 : vector<4x384xf32>
    %c2_i32 = arith.constant 2 : i32
    %12 = tpu.dynamic_rotate %11 by %c2_i32 dim 1 : vector<4x384xf32>, i32 -> vector<4x384xf32>
    %13 = arith.subf %12, %11 : vector<4x384xf32>
    %14 = vector.broadcast %4 : vector<1x384xf32> to vector<4x384xf32>
    %15 = arith.mulf %14, %13 : vector<4x384xf32>
    %16 = arith.addf %11, %15 : vector<4x384xf32>
    %c348_i32 = arith.constant 348 : i32
    %17 = tpu.dynamic_rotate %16 by %c348_i32 dim 1 : vector<4x384xf32>, i32 -> vector<4x384xf32>
    %18 = arith.subf %17, %16 : vector<4x384xf32>
    %19 = vector.broadcast %5 : vector<1x384xf32> to vector<4x384xf32>
    %20 = arith.mulf %19, %18 : vector<4x384xf32>
    %21 = arith.addf %16, %20 : vector<4x384xf32>
    %c36_i32 = arith.constant 36 : i32
    %22 = tpu.dynamic_rotate %21 by %c36_i32 dim 1 : vector<4x384xf32>, i32 -> vector<4x384xf32>
    %23 = arith.subf %22, %21 : vector<4x384xf32>
    %24 = vector.broadcast %6 : vector<1x384xf32> to vector<4x384xf32>
    %25 = arith.mulf %24, %23 : vector<4x384xf32>
    %26 = arith.addf %21, %25 : vector<4x384xf32>
    %cst = arith.constant 0.000000e+00 : f32
    %27 = vector.broadcast %cst : f32 to vector<4x384xf32>
    %c19_i32 = arith.constant 19 : i32
    %28 = tpu.dynamic_rotate %26 by %c19_i32 dim 1 : vector<4x384xf32>, i32 -> vector<4x384xf32>
    %c0_8 = arith.constant 0 : index
    %c0_9 = arith.constant 0 : index
    %c0_10 = arith.constant 0 : index
    %29 = vector.load %arg3[%c0_8, %c0_9, %c0_10] : memref<36x4x1xf32, #tpu.memory_space<vmem>>, vector<1x4x1xf32>
    %30 = vector.shape_cast %29 : vector<1x4x1xf32> to vector<4x1xf32>
    %31 = vector.extract_strided_slice %28 {offsets = [0, 0], sizes = [1, 384], strides = [1, 1]} : vector<4x384xf32> to vector<1x384xf32>
    %32 = vector.broadcast %30 : vector<4x1xf32> to vector<4x384xf32>
    %33 = vector.broadcast %31 : vector<1x384xf32> to vector<4x384xf32>
    %34 = arith.mulf %32, %33 : vector<4x384xf32>
    %35 = arith.addf %27, %34 : vector<4x384xf32>
    %c1_11 = arith.constant 1 : index
    %c0_12 = arith.constant 0 : index
    %c0_13 = arith.constant 0 : index
    %36 = vector.load %arg3[%c1_11, %c0_12, %c0_13] : memref<36x4x1xf32, #tpu.memory_space<vmem>>, vector<1x4x1xf32>
    %37 = vector.shape_cast %36 : vector<1x4x1xf32> to vector<4x1xf32>
    %38 = vector.extract_strided_slice %28 {offsets = [1, 0], sizes = [1, 384], strides = [1, 1]} : vector<4x384xf32> to vector<1x384xf32>
    %39 = vector.broadcast %37 : vector<4x1xf32> to vector<4x384xf32>
    %40 = vector.broadcast %38 : vector<1x384xf32> to vector<4x384xf32>
    %41 = arith.mulf %39, %40 : vector<4x384xf32>
    %42 = arith.addf %35, %41 : vector<4x384xf32>
    %c2_14 = arith.constant 2 : index
    %c0_15 = arith.constant 0 : index
    %c0_16 = arith.constant 0 : index
    %43 = vector.load %arg3[%c2_14, %c0_15, %c0_16] : memref<36x4x1xf32, #tpu.memory_space<vmem>>, vector<1x4x1xf32>
    %44 = vector.shape_cast %43 : vector<1x4x1xf32> to vector<4x1xf32>
    %45 = vector.extract_strided_slice %28 {offsets = [2, 0], sizes = [1, 384], strides = [1, 1]} : vector<4x384xf32> to vector<1x384xf32>
    %46 = vector.broadcast %44 : vector<4x1xf32> to vector<4x384xf32>
    %47 = vector.broadcast %45 : vector<1x384xf32> to vector<4x384xf32>
    %48 = arith.mulf %46, %47 : vector<4x384xf32>
    %49 = arith.addf %42, %48 : vector<4x384xf32>
    %c3_17 = arith.constant 3 : index
    %c0_18 = arith.constant 0 : index
    %c0_19 = arith.constant 0 : index
    %50 = vector.load %arg3[%c3_17, %c0_18, %c0_19] : memref<36x4x1xf32, #tpu.memory_space<vmem>>, vector<1x4x1xf32>
    %51 = vector.shape_cast %50 : vector<1x4x1xf32> to vector<4x1xf32>
    %52 = vector.extract_strided_slice %28 {offsets = [3, 0], sizes = [1, 384], strides = [1, 1]} : vector<4x384xf32> to vector<1x384xf32>
    %53 = vector.broadcast %51 : vector<4x1xf32> to vector<4x384xf32>
    %54 = vector.broadcast %52 : vector<1x384xf32> to vector<4x384xf32>
    %55 = arith.mulf %53, %54 : vector<4x384xf32>
    %56 = arith.addf %49, %55 : vector<4x384xf32>
    %c18_i32 = arith.constant 18 : i32
    %57 = tpu.dynamic_rotate %26 by %c18_i32 dim 1 : vector<4x384xf32>, i32 -> vector<4x384xf32>
    %c4_20 = arith.constant 4 : index
    %c0_21 = arith.constant 0 : index
    %c0_22 = arith.constant 0 : index
    %58 = vector.load %arg3[%c4_20, %c0_21, %c0_22] : memref<36x4x1xf32, #tpu.memory_space<vmem>>, vector<1x4x1xf32>
    %59 = vector.shape_cast %58 : vector<1x4x1xf32> to vector<4x1xf32>
    %60 = vector.extract_strided_slice %57 {offsets = [0, 0], sizes = [1, 384], strides = [1, 1]} : vector<4x384xf32> to vector<1x384xf32>
    %61 = vector.broadcast %59 : vector<4x1xf32> to vector<4x384xf32>
    %62 = vector.broadcast %60 : vector<1x384xf32> to vector<4x384xf32>
    %63 = arith.mulf %61, %62 : vector<4x384xf32>
    %64 = arith.addf %56, %63 : vector<4x384xf32>
    %c5 = arith.constant 5 : index
    %c0_23 = arith.constant 0 : index
    %c0_24 = arith.constant 0 : index
    %65 = vector.load %arg3[%c5, %c0_23, %c0_24] : memref<36x4x1xf32, #tpu.memory_space<vmem>>, vector<1x4x1xf32>
    %66 = vector.shape_cast %65 : vector<1x4x1xf32> to vector<4x1xf32>
    %67 = vector.extract_strided_slice %57 {offsets = [1, 0], sizes = [1, 384], strides = [1, 1]} : vector<4x384xf32> to vector<1x384xf32>
    %68 = vector.broadcast %66 : vector<4x1xf32> to vector<4x384xf32>
    %69 = vector.broadcast %67 : vector<1x384xf32> to vector<4x384xf32>
    %70 = arith.mulf %68, %69 : vector<4x384xf32>
    %71 = arith.addf %64, %70 : vector<4x384xf32>
    %c6 = arith.constant 6 : index
    %c0_25 = arith.constant 0 : index
    %c0_26 = arith.constant 0 : index
    %72 = vector.load %arg3[%c6, %c0_25, %c0_26] : memref<36x4x1xf32, #tpu.memory_space<vmem>>, vector<1x4x1xf32>
    %73 = vector.shape_cast %72 : vector<1x4x1xf32> to vector<4x1xf32>
    %74 = vector.extract_strided_slice %57 {offsets = [2, 0], sizes = [1, 384], strides = [1, 1]} : vector<4x384xf32> to vector<1x384xf32>
    %75 = vector.broadcast %73 : vector<4x1xf32> to vector<4x384xf32>
    %76 = vector.broadcast %74 : vector<1x384xf32> to vector<4x384xf32>
    %77 = arith.mulf %75, %76 : vector<4x384xf32>
    %78 = arith.addf %71, %77 : vector<4x384xf32>
    %c7 = arith.constant 7 : index
    %c0_27 = arith.constant 0 : index
    %c0_28 = arith.constant 0 : index
    %79 = vector.load %arg3[%c7, %c0_27, %c0_28] : memref<36x4x1xf32, #tpu.memory_space<vmem>>, vector<1x4x1xf32>
    %80 = vector.shape_cast %79 : vector<1x4x1xf32> to vector<4x1xf32>
    %81 = vector.extract_strided_slice %57 {offsets = [3, 0], sizes = [1, 384], strides = [1, 1]} : vector<4x384xf32> to vector<1x384xf32>
    %82 = vector.broadcast %80 : vector<4x1xf32> to vector<4x384xf32>
    %83 = vector.broadcast %81 : vector<1x384xf32> to vector<4x384xf32>
    %84 = arith.mulf %82, %83 : vector<4x384xf32>
    %85 = arith.addf %78, %84 : vector<4x384xf32>
    %c17_i32 = arith.constant 17 : i32
    %86 = tpu.dynamic_rotate %26 by %c17_i32 dim 1 : vector<4x384xf32>, i32 -> vector<4x384xf32>
    %c8 = arith.constant 8 : index
    %c0_29 = arith.constant 0 : index
    %c0_30 = arith.constant 0 : index
    %87 = vector.load %arg3[%c8, %c0_29, %c0_30] : memref<36x4x1xf32, #tpu.memory_space<vmem>>, vector<1x4x1xf32>
    %88 = vector.shape_cast %87 : vector<1x4x1xf32> to vector<4x1xf32>
    %89 = vector.extract_strided_slice %86 {offsets = [0, 0], sizes = [1, 384], strides = [1, 1]} : vector<4x384xf32> to vector<1x384xf32>
    %90 = vector.broadcast %88 : vector<4x1xf32> to vector<4x384xf32>
    %91 = vector.broadcast %89 : vector<1x384xf32> to vector<4x384xf32>
    %92 = arith.mulf %90, %91 : vector<4x384xf32>
    %93 = arith.addf %85, %92 : vector<4x384xf32>
    %c9 = arith.constant 9 : index
    %c0_31 = arith.constant 0 : index
    %c0_32 = arith.constant 0 : index
    %94 = vector.load %arg3[%c9, %c0_31, %c0_32] : memref<36x4x1xf32, #tpu.memory_space<vmem>>, vector<1x4x1xf32>
    %95 = vector.shape_cast %94 : vector<1x4x1xf32> to vector<4x1xf32>
    %96 = vector.extract_strided_slice %86 {offsets = [1, 0], sizes = [1, 384], strides = [1, 1]} : vector<4x384xf32> to vector<1x384xf32>
    %97 = vector.broadcast %95 : vector<4x1xf32> to vector<4x384xf32>
    %98 = vector.broadcast %96 : vector<1x384xf32> to vector<4x384xf32>
    %99 = arith.mulf %97, %98 : vector<4x384xf32>
    %100 = arith.addf %93, %99 : vector<4x384xf32>
    %c10 = arith.constant 10 : index
    %c0_33 = arith.constant 0 : index
    %c0_34 = arith.constant 0 : index
    %101 = vector.load %arg3[%c10, %c0_33, %c0_34] : memref<36x4x1xf32, #tpu.memory_space<vmem>>, vector<1x4x1xf32>
    %102 = vector.shape_cast %101 : vector<1x4x1xf32> to vector<4x1xf32>
    %103 = vector.extract_strided_slice %86 {offsets = [2, 0], sizes = [1, 384], strides = [1, 1]} : vector<4x384xf32> to vector<1x384xf32>
    %104 = vector.broadcast %102 : vector<4x1xf32> to vector<4x384xf32>
    %105 = vector.broadcast %103 : vector<1x384xf32> to vector<4x384xf32>
    %106 = arith.mulf %104, %105 : vector<4x384xf32>
    %107 = arith.addf %100, %106 : vector<4x384xf32>
    %c11 = arith.constant 11 : index
    %c0_35 = arith.constant 0 : index
    %c0_36 = arith.constant 0 : index
    %108 = vector.load %arg3[%c11, %c0_35, %c0_36] : memref<36x4x1xf32, #tpu.memory_space<vmem>>, vector<1x4x1xf32>
    %109 = vector.shape_cast %108 : vector<1x4x1xf32> to vector<4x1xf32>
    %110 = vector.extract_strided_slice %86 {offsets = [3, 0], sizes = [1, 384], strides = [1, 1]} : vector<4x384xf32> to vector<1x384xf32>
    %111 = vector.broadcast %109 : vector<4x1xf32> to vector<4x384xf32>
    %112 = vector.broadcast %110 : vector<1x384xf32> to vector<4x384xf32>
    %113 = arith.mulf %111, %112 : vector<4x384xf32>
    %114 = arith.addf %107, %113 : vector<4x384xf32>
    %c1_i32 = arith.constant 1 : i32
    %115 = tpu.dynamic_rotate %26 by %c1_i32 dim 1 : vector<4x384xf32>, i32 -> vector<4x384xf32>
    %c12 = arith.constant 12 : index
    %c0_37 = arith.constant 0 : index
    %c0_38 = arith.constant 0 : index
    %116 = vector.load %arg3[%c12, %c0_37, %c0_38] : memref<36x4x1xf32, #tpu.memory_space<vmem>>, vector<1x4x1xf32>
    %117 = vector.shape_cast %116 : vector<1x4x1xf32> to vector<4x1xf32>
    %118 = vector.extract_strided_slice %115 {offsets = [0, 0], sizes = [1, 384], strides = [1, 1]} : vector<4x384xf32> to vector<1x384xf32>
    %119 = vector.broadcast %117 : vector<4x1xf32> to vector<4x384xf32>
    %120 = vector.broadcast %118 : vector<1x384xf32> to vector<4x384xf32>
    %121 = arith.mulf %119, %120 : vector<4x384xf32>
    %122 = arith.addf %114, %121 : vector<4x384xf32>
    %c13 = arith.constant 13 : index
    %c0_39 = arith.constant 0 : index
    %c0_40 = arith.constant 0 : index
    %123 = vector.load %arg3[%c13, %c0_39, %c0_40] : memref<36x4x1xf32, #tpu.memory_space<vmem>>, vector<1x4x1xf32>
    %124 = vector.shape_cast %123 : vector<1x4x1xf32> to vector<4x1xf32>
    %125 = vector.extract_strided_slice %115 {offsets = [1, 0], sizes = [1, 384], strides = [1, 1]} : vector<4x384xf32> to vector<1x384xf32>
    %126 = vector.broadcast %124 : vector<4x1xf32> to vector<4x384xf32>
    %127 = vector.broadcast %125 : vector<1x384xf32> to vector<4x384xf32>
    %128 = arith.mulf %126, %127 : vector<4x384xf32>
    %129 = arith.addf %122, %128 : vector<4x384xf32>
    %c14 = arith.constant 14 : index
    %c0_41 = arith.constant 0 : index
    %c0_42 = arith.constant 0 : index
    %130 = vector.load %arg3[%c14, %c0_41, %c0_42] : memref<36x4x1xf32, #tpu.memory_space<vmem>>, vector<1x4x1xf32>
    %131 = vector.shape_cast %130 : vector<1x4x1xf32> to vector<4x1xf32>
    %132 = vector.extract_strided_slice %115 {offsets = [2, 0], sizes = [1, 384], strides = [1, 1]} : vector<4x384xf32> to vector<1x384xf32>
    %133 = vector.broadcast %131 : vector<4x1xf32> to vector<4x384xf32>
    %134 = vector.broadcast %132 : vector<1x384xf32> to vector<4x384xf32>
    %135 = arith.mulf %133, %134 : vector<4x384xf32>
    %136 = arith.addf %129, %135 : vector<4x384xf32>
    %c15 = arith.constant 15 : index
    %c0_43 = arith.constant 0 : index
    %c0_44 = arith.constant 0 : index
    %137 = vector.load %arg3[%c15, %c0_43, %c0_44] : memref<36x4x1xf32, #tpu.memory_space<vmem>>, vector<1x4x1xf32>
    %138 = vector.shape_cast %137 : vector<1x4x1xf32> to vector<4x1xf32>
    %139 = vector.extract_strided_slice %115 {offsets = [3, 0], sizes = [1, 384], strides = [1, 1]} : vector<4x384xf32> to vector<1x384xf32>
    %140 = vector.broadcast %138 : vector<4x1xf32> to vector<4x384xf32>
    %141 = vector.broadcast %139 : vector<1x384xf32> to vector<4x384xf32>
    %142 = arith.mulf %140, %141 : vector<4x384xf32>
    %143 = arith.addf %136, %142 : vector<4x384xf32>
    %c16 = arith.constant 16 : index
    %c0_45 = arith.constant 0 : index
    %c0_46 = arith.constant 0 : index
    %144 = vector.load %arg3[%c16, %c0_45, %c0_46] : memref<36x4x1xf32, #tpu.memory_space<vmem>>, vector<1x4x1xf32>
    %145 = vector.shape_cast %144 : vector<1x4x1xf32> to vector<4x1xf32>
    %146 = vector.extract_strided_slice %26 {offsets = [0, 0], sizes = [1, 384], strides = [1, 1]} : vector<4x384xf32> to vector<1x384xf32>
    %147 = vector.broadcast %145 : vector<4x1xf32> to vector<4x384xf32>
    %148 = vector.broadcast %146 : vector<1x384xf32> to vector<4x384xf32>
    %149 = arith.mulf %147, %148 : vector<4x384xf32>
    %150 = arith.addf %143, %149 : vector<4x384xf32>
    %c17 = arith.constant 17 : index
    %c0_47 = arith.constant 0 : index
    %c0_48 = arith.constant 0 : index
    %151 = vector.load %arg3[%c17, %c0_47, %c0_48] : memref<36x4x1xf32, #tpu.memory_space<vmem>>, vector<1x4x1xf32>
    %152 = vector.shape_cast %151 : vector<1x4x1xf32> to vector<4x1xf32>
    %153 = vector.extract_strided_slice %26 {offsets = [1, 0], sizes = [1, 384], strides = [1, 1]} : vector<4x384xf32> to vector<1x384xf32>
    %154 = vector.broadcast %152 : vector<4x1xf32> to vector<4x384xf32>
    %155 = vector.broadcast %153 : vector<1x384xf32> to vector<4x384xf32>
    %156 = arith.mulf %154, %155 : vector<4x384xf32>
    %157 = arith.addf %150, %156 : vector<4x384xf32>
    %c18 = arith.constant 18 : index
    %c0_49 = arith.constant 0 : index
    %c0_50 = arith.constant 0 : index
    %158 = vector.load %arg3[%c18, %c0_49, %c0_50] : memref<36x4x1xf32, #tpu.memory_space<vmem>>, vector<1x4x1xf32>
    %159 = vector.shape_cast %158 : vector<1x4x1xf32> to vector<4x1xf32>
    %160 = vector.extract_strided_slice %26 {offsets = [2, 0], sizes = [1, 384], strides = [1, 1]} : vector<4x384xf32> to vector<1x384xf32>
    %161 = vector.broadcast %159 : vector<4x1xf32> to vector<4x384xf32>
    %162 = vector.broadcast %160 : vector<1x384xf32> to vector<4x384xf32>
    %163 = arith.mulf %161, %162 : vector<4x384xf32>
    %164 = arith.addf %157, %163 : vector<4x384xf32>
    %c19 = arith.constant 19 : index
    %c0_51 = arith.constant 0 : index
    %c0_52 = arith.constant 0 : index
    %165 = vector.load %arg3[%c19, %c0_51, %c0_52] : memref<36x4x1xf32, #tpu.memory_space<vmem>>, vector<1x4x1xf32>
    %166 = vector.shape_cast %165 : vector<1x4x1xf32> to vector<4x1xf32>
    %167 = vector.extract_strided_slice %26 {offsets = [3, 0], sizes = [1, 384], strides = [1, 1]} : vector<4x384xf32> to vector<1x384xf32>
    %168 = vector.broadcast %166 : vector<4x1xf32> to vector<4x384xf32>
    %169 = vector.broadcast %167 : vector<1x384xf32> to vector<4x384xf32>
    %170 = arith.mulf %168, %169 : vector<4x384xf32>
    %171 = arith.addf %164, %170 : vector<4x384xf32>
    %c383_i32 = arith.constant 383 : i32
    %172 = tpu.dynamic_rotate %26 by %c383_i32 dim 1 : vector<4x384xf32>, i32 -> vector<4x384xf32>
    %c20 = arith.constant 20 : index
    %c0_53 = arith.constant 0 : index
    %c0_54 = arith.constant 0 : index
    %173 = vector.load %arg3[%c20, %c0_53, %c0_54] : memref<36x4x1xf32, #tpu.memory_space<vmem>>, vector<1x4x1xf32>
    %174 = vector.shape_cast %173 : vector<1x4x1xf32> to vector<4x1xf32>
    %175 = vector.extract_strided_slice %172 {offsets = [0, 0], sizes = [1, 384], strides = [1, 1]} : vector<4x384xf32> to vector<1x384xf32>
    %176 = vector.broadcast %174 : vector<4x1xf32> to vector<4x384xf32>
    %177 = vector.broadcast %175 : vector<1x384xf32> to vector<4x384xf32>
    %178 = arith.mulf %176, %177 : vector<4x384xf32>
    %179 = arith.addf %171, %178 : vector<4x384xf32>
    %c21 = arith.constant 21 : index
    %c0_55 = arith.constant 0 : index
    %c0_56 = arith.constant 0 : index
    %180 = vector.load %arg3[%c21, %c0_55, %c0_56] : memref<36x4x1xf32, #tpu.memory_space<vmem>>, vector<1x4x1xf32>
    %181 = vector.shape_cast %180 : vector<1x4x1xf32> to vector<4x1xf32>
    %182 = vector.extract_strided_slice %172 {offsets = [1, 0], sizes = [1, 384], strides = [1, 1]} : vector<4x384xf32> to vector<1x384xf32>
    %183 = vector.broadcast %181 : vector<4x1xf32> to vector<4x384xf32>
    %184 = vector.broadcast %182 : vector<1x384xf32> to vector<4x384xf32>
    %185 = arith.mulf %183, %184 : vector<4x384xf32>
    %186 = arith.addf %179, %185 : vector<4x384xf32>
    %c22 = arith.constant 22 : index
    %c0_57 = arith.constant 0 : index
    %c0_58 = arith.constant 0 : index
    %187 = vector.load %arg3[%c22, %c0_57, %c0_58] : memref<36x4x1xf32, #tpu.memory_space<vmem>>, vector<1x4x1xf32>
    %188 = vector.shape_cast %187 : vector<1x4x1xf32> to vector<4x1xf32>
    %189 = vector.extract_strided_slice %172 {offsets = [2, 0], sizes = [1, 384], strides = [1, 1]} : vector<4x384xf32> to vector<1x384xf32>
    %190 = vector.broadcast %188 : vector<4x1xf32> to vector<4x384xf32>
    %191 = vector.broadcast %189 : vector<1x384xf32> to vector<4x384xf32>
    %192 = arith.mulf %190, %191 : vector<4x384xf32>
    %193 = arith.addf %186, %192 : vector<4x384xf32>
    %c23 = arith.constant 23 : index
    %c0_59 = arith.constant 0 : index
    %c0_60 = arith.constant 0 : index
    %194 = vector.load %arg3[%c23, %c0_59, %c0_60] : memref<36x4x1xf32, #tpu.memory_space<vmem>>, vector<1x4x1xf32>
    %195 = vector.shape_cast %194 : vector<1x4x1xf32> to vector<4x1xf32>
    %196 = vector.extract_strided_slice %172 {offsets = [3, 0], sizes = [1, 384], strides = [1, 1]} : vector<4x384xf32> to vector<1x384xf32>
    %197 = vector.broadcast %195 : vector<4x1xf32> to vector<4x384xf32>
    %198 = vector.broadcast %196 : vector<1x384xf32> to vector<4x384xf32>
    %199 = arith.mulf %197, %198 : vector<4x384xf32>
    %200 = arith.addf %193, %199 : vector<4x384xf32>
    %c367_i32 = arith.constant 367 : i32
    %201 = tpu.dynamic_rotate %26 by %c367_i32 dim 1 : vector<4x384xf32>, i32 -> vector<4x384xf32>
    %c24 = arith.constant 24 : index
    %c0_61 = arith.constant 0 : index
    %c0_62 = arith.constant 0 : index
    %202 = vector.load %arg3[%c24, %c0_61, %c0_62] : memref<36x4x1xf32, #tpu.memory_space<vmem>>, vector<1x4x1xf32>
    %203 = vector.shape_cast %202 : vector<1x4x1xf32> to vector<4x1xf32>
    %204 = vector.extract_strided_slice %201 {offsets = [0, 0], sizes = [1, 384], strides = [1, 1]} : vector<4x384xf32> to vector<1x384xf32>
    %205 = vector.broadcast %203 : vector<4x1xf32> to vector<4x384xf32>
    %206 = vector.broadcast %204 : vector<1x384xf32> to vector<4x384xf32>
    %207 = arith.mulf %205, %206 : vector<4x384xf32>
    %208 = arith.addf %200, %207 : vector<4x384xf32>
    %c25 = arith.constant 25 : index
    %c0_63 = arith.constant 0 : index
    %c0_64 = arith.constant 0 : index
    %209 = vector.load %arg3[%c25, %c0_63, %c0_64] : memref<36x4x1xf32, #tpu.memory_space<vmem>>, vector<1x4x1xf32>
    %210 = vector.shape_cast %209 : vector<1x4x1xf32> to vector<4x1xf32>
    %211 = vector.extract_strided_slice %201 {offsets = [1, 0], sizes = [1, 384], strides = [1, 1]} : vector<4x384xf32> to vector<1x384xf32>
    %212 = vector.broadcast %210 : vector<4x1xf32> to vector<4x384xf32>
    %213 = vector.broadcast %211 : vector<1x384xf32> to vector<4x384xf32>
    %214 = arith.mulf %212, %213 : vector<4x384xf32>
    %215 = arith.addf %208, %214 : vector<4x384xf32>
    %c26 = arith.constant 26 : index
    %c0_65 = arith.constant 0 : index
    %c0_66 = arith.constant 0 : index
    %216 = vector.load %arg3[%c26, %c0_65, %c0_66] : memref<36x4x1xf32, #tpu.memory_space<vmem>>, vector<1x4x1xf32>
    %217 = vector.shape_cast %216 : vector<1x4x1xf32> to vector<4x1xf32>
    %218 = vector.extract_strided_slice %201 {offsets = [2, 0], sizes = [1, 384], strides = [1, 1]} : vector<4x384xf32> to vector<1x384xf32>
    %219 = vector.broadcast %217 : vector<4x1xf32> to vector<4x384xf32>
    %220 = vector.broadcast %218 : vector<1x384xf32> to vector<4x384xf32>
    %221 = arith.mulf %219, %220 : vector<4x384xf32>
    %222 = arith.addf %215, %221 : vector<4x384xf32>
    %c27 = arith.constant 27 : index
    %c0_67 = arith.constant 0 : index
    %c0_68 = arith.constant 0 : index
    %223 = vector.load %arg3[%c27, %c0_67, %c0_68] : memref<36x4x1xf32, #tpu.memory_space<vmem>>, vector<1x4x1xf32>
    %224 = vector.shape_cast %223 : vector<1x4x1xf32> to vector<4x1xf32>
    %225 = vector.extract_strided_slice %201 {offsets = [3, 0], sizes = [1, 384], strides = [1, 1]} : vector<4x384xf32> to vector<1x384xf32>
    %226 = vector.broadcast %224 : vector<4x1xf32> to vector<4x384xf32>
    %227 = vector.broadcast %225 : vector<1x384xf32> to vector<4x384xf32>
    %228 = arith.mulf %226, %227 : vector<4x384xf32>
    %229 = arith.addf %222, %228 : vector<4x384xf32>
    %c366_i32 = arith.constant 366 : i32
    %230 = tpu.dynamic_rotate %26 by %c366_i32 dim 1 : vector<4x384xf32>, i32 -> vector<4x384xf32>
    %c28 = arith.constant 28 : index
    %c0_69 = arith.constant 0 : index
    %c0_70 = arith.constant 0 : index
    %231 = vector.load %arg3[%c28, %c0_69, %c0_70] : memref<36x4x1xf32, #tpu.memory_space<vmem>>, vector<1x4x1xf32>
    %232 = vector.shape_cast %231 : vector<1x4x1xf32> to vector<4x1xf32>
    %233 = vector.extract_strided_slice %230 {offsets = [0, 0], sizes = [1, 384], strides = [1, 1]} : vector<4x384xf32> to vector<1x384xf32>
    %234 = vector.broadcast %232 : vector<4x1xf32> to vector<4x384xf32>
    %235 = vector.broadcast %233 : vector<1x384xf32> to vector<4x384xf32>
    %236 = arith.mulf %234, %235 : vector<4x384xf32>
    %237 = arith.addf %229, %236 : vector<4x384xf32>
    %c29 = arith.constant 29 : index
    %c0_71 = arith.constant 0 : index
    %c0_72 = arith.constant 0 : index
    %238 = vector.load %arg3[%c29, %c0_71, %c0_72] : memref<36x4x1xf32, #tpu.memory_space<vmem>>, vector<1x4x1xf32>
    %239 = vector.shape_cast %238 : vector<1x4x1xf32> to vector<4x1xf32>
    %240 = vector.extract_strided_slice %230 {offsets = [1, 0], sizes = [1, 384], strides = [1, 1]} : vector<4x384xf32> to vector<1x384xf32>
    %241 = vector.broadcast %239 : vector<4x1xf32> to vector<4x384xf32>
    %242 = vector.broadcast %240 : vector<1x384xf32> to vector<4x384xf32>
    %243 = arith.mulf %241, %242 : vector<4x384xf32>
    %244 = arith.addf %237, %243 : vector<4x384xf32>
    %c30 = arith.constant 30 : index
    %c0_73 = arith.constant 0 : index
    %c0_74 = arith.constant 0 : index
    %245 = vector.load %arg3[%c30, %c0_73, %c0_74] : memref<36x4x1xf32, #tpu.memory_space<vmem>>, vector<1x4x1xf32>
    %246 = vector.shape_cast %245 : vector<1x4x1xf32> to vector<4x1xf32>
    %247 = vector.extract_strided_slice %230 {offsets = [2, 0], sizes = [1, 384], strides = [1, 1]} : vector<4x384xf32> to vector<1x384xf32>
    %248 = vector.broadcast %246 : vector<4x1xf32> to vector<4x384xf32>
    %249 = vector.broadcast %247 : vector<1x384xf32> to vector<4x384xf32>
    %250 = arith.mulf %248, %249 : vector<4x384xf32>
    %251 = arith.addf %244, %250 : vector<4x384xf32>
    %c31 = arith.constant 31 : index
    %c0_75 = arith.constant 0 : index
    %c0_76 = arith.constant 0 : index
    %252 = vector.load %arg3[%c31, %c0_75, %c0_76] : memref<36x4x1xf32, #tpu.memory_space<vmem>>, vector<1x4x1xf32>
    %253 = vector.shape_cast %252 : vector<1x4x1xf32> to vector<4x1xf32>
    %254 = vector.extract_strided_slice %230 {offsets = [3, 0], sizes = [1, 384], strides = [1, 1]} : vector<4x384xf32> to vector<1x384xf32>
    %255 = vector.broadcast %253 : vector<4x1xf32> to vector<4x384xf32>
    %256 = vector.broadcast %254 : vector<1x384xf32> to vector<4x384xf32>
    %257 = arith.mulf %255, %256 : vector<4x384xf32>
    %258 = arith.addf %251, %257 : vector<4x384xf32>
    %c365_i32 = arith.constant 365 : i32
    %259 = tpu.dynamic_rotate %26 by %c365_i32 dim 1 : vector<4x384xf32>, i32 -> vector<4x384xf32>
    %c32 = arith.constant 32 : index
    %c0_77 = arith.constant 0 : index
    %c0_78 = arith.constant 0 : index
    %260 = vector.load %arg3[%c32, %c0_77, %c0_78] : memref<36x4x1xf32, #tpu.memory_space<vmem>>, vector<1x4x1xf32>
    %261 = vector.shape_cast %260 : vector<1x4x1xf32> to vector<4x1xf32>
    %262 = vector.extract_strided_slice %259 {offsets = [0, 0], sizes = [1, 384], strides = [1, 1]} : vector<4x384xf32> to vector<1x384xf32>
    %263 = vector.broadcast %261 : vector<4x1xf32> to vector<4x384xf32>
    %264 = vector.broadcast %262 : vector<1x384xf32> to vector<4x384xf32>
    %265 = arith.mulf %263, %264 : vector<4x384xf32>
    %266 = arith.addf %258, %265 : vector<4x384xf32>
    %c33 = arith.constant 33 : index
    %c0_79 = arith.constant 0 : index
    %c0_80 = arith.constant 0 : index
    %267 = vector.load %arg3[%c33, %c0_79, %c0_80] : memref<36x4x1xf32, #tpu.memory_space<vmem>>, vector<1x4x1xf32>
    %268 = vector.shape_cast %267 : vector<1x4x1xf32> to vector<4x1xf32>
    %269 = vector.extract_strided_slice %259 {offsets = [1, 0], sizes = [1, 384], strides = [1, 1]} : vector<4x384xf32> to vector<1x384xf32>
    %270 = vector.broadcast %268 : vector<4x1xf32> to vector<4x384xf32>
    %271 = vector.broadcast %269 : vector<1x384xf32> to vector<4x384xf32>
    %272 = arith.mulf %270, %271 : vector<4x384xf32>
    %273 = arith.addf %266, %272 : vector<4x384xf32>
    %c34 = arith.constant 34 : index
    %c0_81 = arith.constant 0 : index
    %c0_82 = arith.constant 0 : index
    %274 = vector.load %arg3[%c34, %c0_81, %c0_82] : memref<36x4x1xf32, #tpu.memory_space<vmem>>, vector<1x4x1xf32>
    %275 = vector.shape_cast %274 : vector<1x4x1xf32> to vector<4x1xf32>
    %276 = vector.extract_strided_slice %259 {offsets = [2, 0], sizes = [1, 384], strides = [1, 1]} : vector<4x384xf32> to vector<1x384xf32>
    %277 = vector.broadcast %275 : vector<4x1xf32> to vector<4x384xf32>
    %278 = vector.broadcast %276 : vector<1x384xf32> to vector<4x384xf32>
    %279 = arith.mulf %277, %278 : vector<4x384xf32>
    %280 = arith.addf %273, %279 : vector<4x384xf32>
    %c35 = arith.constant 35 : index
    %c0_83 = arith.constant 0 : index
    %c0_84 = arith.constant 0 : index
    %281 = vector.load %arg3[%c35, %c0_83, %c0_84] : memref<36x4x1xf32, #tpu.memory_space<vmem>>, vector<1x4x1xf32>
    %282 = vector.shape_cast %281 : vector<1x4x1xf32> to vector<4x1xf32>
    %283 = vector.extract_strided_slice %259 {offsets = [3, 0], sizes = [1, 384], strides = [1, 1]} : vector<4x384xf32> to vector<1x384xf32>
    %284 = vector.broadcast %282 : vector<4x1xf32> to vector<4x384xf32>
    %285 = vector.broadcast %283 : vector<1x384xf32> to vector<4x384xf32>
    %286 = arith.mulf %284, %285 : vector<4x384xf32>
    %287 = arith.addf %280, %286 : vector<4x384xf32>
    %288 = vector.broadcast %2 : vector<1x384xf32> to vector<4x384xf32>
    %289 = arith.mulf %287, %288 : vector<4x384xf32>
    %cst_85 = arith.constant dense<0.000000e+00> : vector<4xf32>
    %290 = vector.multi_reduction <add>, %289, %cst_85 [1] : vector<4x384xf32> to vector<4xf32>
    %291 = vector.shape_cast %290 : vector<4xf32> to vector<4x1xf32>
    %cst_86 = arith.constant 3.906250e-03 : f32
    %292 = vector.broadcast %cst_86 : f32 to vector<4x1xf32>
    %293 = arith.mulf %291, %292 : vector<4x1xf32>
    %294 = vector.broadcast %293 : vector<4x1xf32> to vector<4x384xf32>
    %295 = arith.subf %287, %294 : vector<4x384xf32>
    %296 = arith.mulf %295, %295 : vector<4x384xf32>
    %297 = vector.broadcast %2 : vector<1x384xf32> to vector<4x384xf32>
    %298 = arith.mulf %296, %297 : vector<4x384xf32>
    %cst_87 = arith.constant dense<0.000000e+00> : vector<4xf32>
    %299 = vector.multi_reduction <add>, %298, %cst_87 [1] : vector<4x384xf32> to vector<4xf32>
    %300 = vector.shape_cast %299 : vector<4xf32> to vector<4x1xf32>
    %cst_88 = arith.constant 3.906250e-03 : f32
    %301 = vector.broadcast %cst_88 : f32 to vector<4x1xf32>
    %302 = arith.mulf %300, %301 : vector<4x1xf32>
    %cst_89 = arith.constant 9.99999974E-6 : f32
    %303 = vector.broadcast %cst_89 : f32 to vector<4x1xf32>
    %304 = arith.addf %302, %303 : vector<4x1xf32>
    %305 = math.rsqrt %304 : vector<4x1xf32>
    %306 = vector.broadcast %305 : vector<4x1xf32> to vector<4x384xf32>
    %307 = arith.mulf %295, %306 : vector<4x384xf32>
    %cst_90 = arith.constant 0.000000e+00 : f32
    %308 = vector.broadcast %cst_90 : f32 to vector<4x384xf32>
    %309 = arith.maximumf %307, %308 : vector<4x384xf32>
    %c382_i32_91 = arith.constant 382 : i32
    %310 = tpu.dynamic_rotate %309 by %c382_i32_91 dim 1 : vector<4x384xf32>, i32 -> vector<4x384xf32>
    %311 = arith.subf %310, %309 : vector<4x384xf32>
    %312 = vector.broadcast %3 : vector<1x384xf32> to vector<4x384xf32>
    %313 = arith.mulf %312, %311 : vector<4x384xf32>
    %314 = arith.addf %309, %313 : vector<4x384xf32>
    %c2_i32_92 = arith.constant 2 : i32
    %315 = tpu.dynamic_rotate %314 by %c2_i32_92 dim 1 : vector<4x384xf32>, i32 -> vector<4x384xf32>
    %316 = arith.subf %315, %314 : vector<4x384xf32>
    %317 = vector.broadcast %4 : vector<1x384xf32> to vector<4x384xf32>
    %318 = arith.mulf %317, %316 : vector<4x384xf32>
    %319 = arith.addf %314, %318 : vector<4x384xf32>
    %c348_i32_93 = arith.constant 348 : i32
    %320 = tpu.dynamic_rotate %319 by %c348_i32_93 dim 1 : vector<4x384xf32>, i32 -> vector<4x384xf32>
    %321 = arith.subf %320, %319 : vector<4x384xf32>
    %322 = vector.broadcast %5 : vector<1x384xf32> to vector<4x384xf32>
    %323 = arith.mulf %322, %321 : vector<4x384xf32>
    %324 = arith.addf %319, %323 : vector<4x384xf32>
    %c36_i32_94 = arith.constant 36 : i32
    %325 = tpu.dynamic_rotate %324 by %c36_i32_94 dim 1 : vector<4x384xf32>, i32 -> vector<4x384xf32>
    %326 = arith.subf %325, %324 : vector<4x384xf32>
    %327 = vector.broadcast %6 : vector<1x384xf32> to vector<4x384xf32>
    %328 = arith.mulf %327, %326 : vector<4x384xf32>
    %329 = arith.addf %324, %328 : vector<4x384xf32>
    %cst_95 = arith.constant 0.000000e+00 : f32
    %330 = vector.broadcast %cst_95 : f32 to vector<4x384xf32>
    %c19_i32_96 = arith.constant 19 : i32
    %331 = tpu.dynamic_rotate %329 by %c19_i32_96 dim 1 : vector<4x384xf32>, i32 -> vector<4x384xf32>
    %c0_97 = arith.constant 0 : index
    %c0_98 = arith.constant 0 : index
    %c0_99 = arith.constant 0 : index
    %332 = vector.load %arg4[%c0_97, %c0_98, %c0_99] : memref<36x4x1xf32, #tpu.memory_space<vmem>>, vector<1x4x1xf32>
    %333 = vector.shape_cast %332 : vector<1x4x1xf32> to vector<4x1xf32>
    %334 = vector.extract_strided_slice %331 {offsets = [0, 0], sizes = [1, 384], strides = [1, 1]} : vector<4x384xf32> to vector<1x384xf32>
    %335 = vector.broadcast %333 : vector<4x1xf32> to vector<4x384xf32>
    %336 = vector.broadcast %334 : vector<1x384xf32> to vector<4x384xf32>
    %337 = arith.mulf %335, %336 : vector<4x384xf32>
    %338 = arith.addf %330, %337 : vector<4x384xf32>
    %c1_100 = arith.constant 1 : index
    %c0_101 = arith.constant 0 : index
    %c0_102 = arith.constant 0 : index
    %339 = vector.load %arg4[%c1_100, %c0_101, %c0_102] : memref<36x4x1xf32, #tpu.memory_space<vmem>>, vector<1x4x1xf32>
    %340 = vector.shape_cast %339 : vector<1x4x1xf32> to vector<4x1xf32>
    %341 = vector.extract_strided_slice %331 {offsets = [1, 0], sizes = [1, 384], strides = [1, 1]} : vector<4x384xf32> to vector<1x384xf32>
    %342 = vector.broadcast %340 : vector<4x1xf32> to vector<4x384xf32>
    %343 = vector.broadcast %341 : vector<1x384xf32> to vector<4x384xf32>
    %344 = arith.mulf %342, %343 : vector<4x384xf32>
    %345 = arith.addf %338, %344 : vector<4x384xf32>
    %c2_103 = arith.constant 2 : index
    %c0_104 = arith.constant 0 : index
    %c0_105 = arith.constant 0 : index
    %346 = vector.load %arg4[%c2_103, %c0_104, %c0_105] : memref<36x4x1xf32, #tpu.memory_space<vmem>>, vector<1x4x1xf32>
    %347 = vector.shape_cast %346 : vector<1x4x1xf32> to vector<4x1xf32>
    %348 = vector.extract_strided_slice %331 {offsets = [2, 0], sizes = [1, 384], strides = [1, 1]} : vector<4x384xf32> to vector<1x384xf32>
    %349 = vector.broadcast %347 : vector<4x1xf32> to vector<4x384xf32>
    %350 = vector.broadcast %348 : vector<1x384xf32> to vector<4x384xf32>
    %351 = arith.mulf %349, %350 : vector<4x384xf32>
    %352 = arith.addf %345, %351 : vector<4x384xf32>
    %c3_106 = arith.constant 3 : index
    %c0_107 = arith.constant 0 : index
    %c0_108 = arith.constant 0 : index
    %353 = vector.load %arg4[%c3_106, %c0_107, %c0_108] : memref<36x4x1xf32, #tpu.memory_space<vmem>>, vector<1x4x1xf32>
    %354 = vector.shape_cast %353 : vector<1x4x1xf32> to vector<4x1xf32>
    %355 = vector.extract_strided_slice %331 {offsets = [3, 0], sizes = [1, 384], strides = [1, 1]} : vector<4x384xf32> to vector<1x384xf32>
    %356 = vector.broadcast %354 : vector<4x1xf32> to vector<4x384xf32>
    %357 = vector.broadcast %355 : vector<1x384xf32> to vector<4x384xf32>
    %358 = arith.mulf %356, %357 : vector<4x384xf32>
    %359 = arith.addf %352, %358 : vector<4x384xf32>
    %c18_i32_109 = arith.constant 18 : i32
    %360 = tpu.dynamic_rotate %329 by %c18_i32_109 dim 1 : vector<4x384xf32>, i32 -> vector<4x384xf32>
    %c4_110 = arith.constant 4 : index
    %c0_111 = arith.constant 0 : index
    %c0_112 = arith.constant 0 : index
    %361 = vector.load %arg4[%c4_110, %c0_111, %c0_112] : memref<36x4x1xf32, #tpu.memory_space<vmem>>, vector<1x4x1xf32>
    %362 = vector.shape_cast %361 : vector<1x4x1xf32> to vector<4x1xf32>
    %363 = vector.extract_strided_slice %360 {offsets = [0, 0], sizes = [1, 384], strides = [1, 1]} : vector<4x384xf32> to vector<1x384xf32>
    %364 = vector.broadcast %362 : vector<4x1xf32> to vector<4x384xf32>
    %365 = vector.broadcast %363 : vector<1x384xf32> to vector<4x384xf32>
    %366 = arith.mulf %364, %365 : vector<4x384xf32>
    %367 = arith.addf %359, %366 : vector<4x384xf32>
    %c5_113 = arith.constant 5 : index
    %c0_114 = arith.constant 0 : index
    %c0_115 = arith.constant 0 : index
    %368 = vector.load %arg4[%c5_113, %c0_114, %c0_115] : memref<36x4x1xf32, #tpu.memory_space<vmem>>, vector<1x4x1xf32>
    %369 = vector.shape_cast %368 : vector<1x4x1xf32> to vector<4x1xf32>
    %370 = vector.extract_strided_slice %360 {offsets = [1, 0], sizes = [1, 384], strides = [1, 1]} : vector<4x384xf32> to vector<1x384xf32>
    %371 = vector.broadcast %369 : vector<4x1xf32> to vector<4x384xf32>
    %372 = vector.broadcast %370 : vector<1x384xf32> to vector<4x384xf32>
    %373 = arith.mulf %371, %372 : vector<4x384xf32>
    %374 = arith.addf %367, %373 : vector<4x384xf32>
    %c6_116 = arith.constant 6 : index
    %c0_117 = arith.constant 0 : index
    %c0_118 = arith.constant 0 : index
    %375 = vector.load %arg4[%c6_116, %c0_117, %c0_118] : memref<36x4x1xf32, #tpu.memory_space<vmem>>, vector<1x4x1xf32>
    %376 = vector.shape_cast %375 : vector<1x4x1xf32> to vector<4x1xf32>
    %377 = vector.extract_strided_slice %360 {offsets = [2, 0], sizes = [1, 384], strides = [1, 1]} : vector<4x384xf32> to vector<1x384xf32>
    %378 = vector.broadcast %376 : vector<4x1xf32> to vector<4x384xf32>
    %379 = vector.broadcast %377 : vector<1x384xf32> to vector<4x384xf32>
    %380 = arith.mulf %378, %379 : vector<4x384xf32>
    %381 = arith.addf %374, %380 : vector<4x384xf32>
    %c7_119 = arith.constant 7 : index
    %c0_120 = arith.constant 0 : index
    %c0_121 = arith.constant 0 : index
    %382 = vector.load %arg4[%c7_119, %c0_120, %c0_121] : memref<36x4x1xf32, #tpu.memory_space<vmem>>, vector<1x4x1xf32>
    %383 = vector.shape_cast %382 : vector<1x4x1xf32> to vector<4x1xf32>
    %384 = vector.extract_strided_slice %360 {offsets = [3, 0], sizes = [1, 384], strides = [1, 1]} : vector<4x384xf32> to vector<1x384xf32>
    %385 = vector.broadcast %383 : vector<4x1xf32> to vector<4x384xf32>
    %386 = vector.broadcast %384 : vector<1x384xf32> to vector<4x384xf32>
    %387 = arith.mulf %385, %386 : vector<4x384xf32>
    %388 = arith.addf %381, %387 : vector<4x384xf32>
    %c17_i32_122 = arith.constant 17 : i32
    %389 = tpu.dynamic_rotate %329 by %c17_i32_122 dim 1 : vector<4x384xf32>, i32 -> vector<4x384xf32>
    %c8_123 = arith.constant 8 : index
    %c0_124 = arith.constant 0 : index
    %c0_125 = arith.constant 0 : index
    %390 = vector.load %arg4[%c8_123, %c0_124, %c0_125] : memref<36x4x1xf32, #tpu.memory_space<vmem>>, vector<1x4x1xf32>
    %391 = vector.shape_cast %390 : vector<1x4x1xf32> to vector<4x1xf32>
    %392 = vector.extract_strided_slice %389 {offsets = [0, 0], sizes = [1, 384], strides = [1, 1]} : vector<4x384xf32> to vector<1x384xf32>
    %393 = vector.broadcast %391 : vector<4x1xf32> to vector<4x384xf32>
    %394 = vector.broadcast %392 : vector<1x384xf32> to vector<4x384xf32>
    %395 = arith.mulf %393, %394 : vector<4x384xf32>
    %396 = arith.addf %388, %395 : vector<4x384xf32>
    %c9_126 = arith.constant 9 : index
    %c0_127 = arith.constant 0 : index
    %c0_128 = arith.constant 0 : index
    %397 = vector.load %arg4[%c9_126, %c0_127, %c0_128] : memref<36x4x1xf32, #tpu.memory_space<vmem>>, vector<1x4x1xf32>
    %398 = vector.shape_cast %397 : vector<1x4x1xf32> to vector<4x1xf32>
    %399 = vector.extract_strided_slice %389 {offsets = [1, 0], sizes = [1, 384], strides = [1, 1]} : vector<4x384xf32> to vector<1x384xf32>
    %400 = vector.broadcast %398 : vector<4x1xf32> to vector<4x384xf32>
    %401 = vector.broadcast %399 : vector<1x384xf32> to vector<4x384xf32>
    %402 = arith.mulf %400, %401 : vector<4x384xf32>
    %403 = arith.addf %396, %402 : vector<4x384xf32>
    %c10_129 = arith.constant 10 : index
    %c0_130 = arith.constant 0 : index
    %c0_131 = arith.constant 0 : index
    %404 = vector.load %arg4[%c10_129, %c0_130, %c0_131] : memref<36x4x1xf32, #tpu.memory_space<vmem>>, vector<1x4x1xf32>
    %405 = vector.shape_cast %404 : vector<1x4x1xf32> to vector<4x1xf32>
    %406 = vector.extract_strided_slice %389 {offsets = [2, 0], sizes = [1, 384], strides = [1, 1]} : vector<4x384xf32> to vector<1x384xf32>
    %407 = vector.broadcast %405 : vector<4x1xf32> to vector<4x384xf32>
    %408 = vector.broadcast %406 : vector<1x384xf32> to vector<4x384xf32>
    %409 = arith.mulf %407, %408 : vector<4x384xf32>
    %410 = arith.addf %403, %409 : vector<4x384xf32>
    %c11_132 = arith.constant 11 : index
    %c0_133 = arith.constant 0 : index
    %c0_134 = arith.constant 0 : index
    %411 = vector.load %arg4[%c11_132, %c0_133, %c0_134] : memref<36x4x1xf32, #tpu.memory_space<vmem>>, vector<1x4x1xf32>
    %412 = vector.shape_cast %411 : vector<1x4x1xf32> to vector<4x1xf32>
    %413 = vector.extract_strided_slice %389 {offsets = [3, 0], sizes = [1, 384], strides = [1, 1]} : vector<4x384xf32> to vector<1x384xf32>
    %414 = vector.broadcast %412 : vector<4x1xf32> to vector<4x384xf32>
    %415 = vector.broadcast %413 : vector<1x384xf32> to vector<4x384xf32>
    %416 = arith.mulf %414, %415 : vector<4x384xf32>
    %417 = arith.addf %410, %416 : vector<4x384xf32>
    %c1_i32_135 = arith.constant 1 : i32
    %418 = tpu.dynamic_rotate %329 by %c1_i32_135 dim 1 : vector<4x384xf32>, i32 -> vector<4x384xf32>
    %c12_136 = arith.constant 12 : index
    %c0_137 = arith.constant 0 : index
    %c0_138 = arith.constant 0 : index
    %419 = vector.load %arg4[%c12_136, %c0_137, %c0_138] : memref<36x4x1xf32, #tpu.memory_space<vmem>>, vector<1x4x1xf32>
    %420 = vector.shape_cast %419 : vector<1x4x1xf32> to vector<4x1xf32>
    %421 = vector.extract_strided_slice %418 {offsets = [0, 0], sizes = [1, 384], strides = [1, 1]} : vector<4x384xf32> to vector<1x384xf32>
    %422 = vector.broadcast %420 : vector<4x1xf32> to vector<4x384xf32>
    %423 = vector.broadcast %421 : vector<1x384xf32> to vector<4x384xf32>
    %424 = arith.mulf %422, %423 : vector<4x384xf32>
    %425 = arith.addf %417, %424 : vector<4x384xf32>
    %c13_139 = arith.constant 13 : index
    %c0_140 = arith.constant 0 : index
    %c0_141 = arith.constant 0 : index
    %426 = vector.load %arg4[%c13_139, %c0_140, %c0_141] : memref<36x4x1xf32, #tpu.memory_space<vmem>>, vector<1x4x1xf32>
    %427 = vector.shape_cast %426 : vector<1x4x1xf32> to vector<4x1xf32>
    %428 = vector.extract_strided_slice %418 {offsets = [1, 0], sizes = [1, 384], strides = [1, 1]} : vector<4x384xf32> to vector<1x384xf32>
    %429 = vector.broadcast %427 : vector<4x1xf32> to vector<4x384xf32>
    %430 = vector.broadcast %428 : vector<1x384xf32> to vector<4x384xf32>
    %431 = arith.mulf %429, %430 : vector<4x384xf32>
    %432 = arith.addf %425, %431 : vector<4x384xf32>
    %c14_142 = arith.constant 14 : index
    %c0_143 = arith.constant 0 : index
    %c0_144 = arith.constant 0 : index
    %433 = vector.load %arg4[%c14_142, %c0_143, %c0_144] : memref<36x4x1xf32, #tpu.memory_space<vmem>>, vector<1x4x1xf32>
    %434 = vector.shape_cast %433 : vector<1x4x1xf32> to vector<4x1xf32>
    %435 = vector.extract_strided_slice %418 {offsets = [2, 0], sizes = [1, 384], strides = [1, 1]} : vector<4x384xf32> to vector<1x384xf32>
    %436 = vector.broadcast %434 : vector<4x1xf32> to vector<4x384xf32>
    %437 = vector.broadcast %435 : vector<1x384xf32> to vector<4x384xf32>
    %438 = arith.mulf %436, %437 : vector<4x384xf32>
    %439 = arith.addf %432, %438 : vector<4x384xf32>
    %c15_145 = arith.constant 15 : index
    %c0_146 = arith.constant 0 : index
    %c0_147 = arith.constant 0 : index
    %440 = vector.load %arg4[%c15_145, %c0_146, %c0_147] : memref<36x4x1xf32, #tpu.memory_space<vmem>>, vector<1x4x1xf32>
    %441 = vector.shape_cast %440 : vector<1x4x1xf32> to vector<4x1xf32>
    %442 = vector.extract_strided_slice %418 {offsets = [3, 0], sizes = [1, 384], strides = [1, 1]} : vector<4x384xf32> to vector<1x384xf32>
    %443 = vector.broadcast %441 : vector<4x1xf32> to vector<4x384xf32>
    %444 = vector.broadcast %442 : vector<1x384xf32> to vector<4x384xf32>
    %445 = arith.mulf %443, %444 : vector<4x384xf32>
    %446 = arith.addf %439, %445 : vector<4x384xf32>
    %c16_148 = arith.constant 16 : index
    %c0_149 = arith.constant 0 : index
    %c0_150 = arith.constant 0 : index
    %447 = vector.load %arg4[%c16_148, %c0_149, %c0_150] : memref<36x4x1xf32, #tpu.memory_space<vmem>>, vector<1x4x1xf32>
    %448 = vector.shape_cast %447 : vector<1x4x1xf32> to vector<4x1xf32>
    %449 = vector.extract_strided_slice %329 {offsets = [0, 0], sizes = [1, 384], strides = [1, 1]} : vector<4x384xf32> to vector<1x384xf32>
    %450 = vector.broadcast %448 : vector<4x1xf32> to vector<4x384xf32>
    %451 = vector.broadcast %449 : vector<1x384xf32> to vector<4x384xf32>
    %452 = arith.mulf %450, %451 : vector<4x384xf32>
    %453 = arith.addf %446, %452 : vector<4x384xf32>
    %c17_151 = arith.constant 17 : index
    %c0_152 = arith.constant 0 : index
    %c0_153 = arith.constant 0 : index
    %454 = vector.load %arg4[%c17_151, %c0_152, %c0_153] : memref<36x4x1xf32, #tpu.memory_space<vmem>>, vector<1x4x1xf32>
    %455 = vector.shape_cast %454 : vector<1x4x1xf32> to vector<4x1xf32>
    %456 = vector.extract_strided_slice %329 {offsets = [1, 0], sizes = [1, 384], strides = [1, 1]} : vector<4x384xf32> to vector<1x384xf32>
    %457 = vector.broadcast %455 : vector<4x1xf32> to vector<4x384xf32>
    %458 = vector.broadcast %456 : vector<1x384xf32> to vector<4x384xf32>
    %459 = arith.mulf %457, %458 : vector<4x384xf32>
    %460 = arith.addf %453, %459 : vector<4x384xf32>
    %c18_154 = arith.constant 18 : index
    %c0_155 = arith.constant 0 : index
    %c0_156 = arith.constant 0 : index
    %461 = vector.load %arg4[%c18_154, %c0_155, %c0_156] : memref<36x4x1xf32, #tpu.memory_space<vmem>>, vector<1x4x1xf32>
    %462 = vector.shape_cast %461 : vector<1x4x1xf32> to vector<4x1xf32>
    %463 = vector.extract_strided_slice %329 {offsets = [2, 0], sizes = [1, 384], strides = [1, 1]} : vector<4x384xf32> to vector<1x384xf32>
    %464 = vector.broadcast %462 : vector<4x1xf32> to vector<4x384xf32>
    %465 = vector.broadcast %463 : vector<1x384xf32> to vector<4x384xf32>
    %466 = arith.mulf %464, %465 : vector<4x384xf32>
    %467 = arith.addf %460, %466 : vector<4x384xf32>
    %c19_157 = arith.constant 19 : index
    %c0_158 = arith.constant 0 : index
    %c0_159 = arith.constant 0 : index
    %468 = vector.load %arg4[%c19_157, %c0_158, %c0_159] : memref<36x4x1xf32, #tpu.memory_space<vmem>>, vector<1x4x1xf32>
    %469 = vector.shape_cast %468 : vector<1x4x1xf32> to vector<4x1xf32>
    %470 = vector.extract_strided_slice %329 {offsets = [3, 0], sizes = [1, 384], strides = [1, 1]} : vector<4x384xf32> to vector<1x384xf32>
    %471 = vector.broadcast %469 : vector<4x1xf32> to vector<4x384xf32>
    %472 = vector.broadcast %470 : vector<1x384xf32> to vector<4x384xf32>
    %473 = arith.mulf %471, %472 : vector<4x384xf32>
    %474 = arith.addf %467, %473 : vector<4x384xf32>
    %c383_i32_160 = arith.constant 383 : i32
    %475 = tpu.dynamic_rotate %329 by %c383_i32_160 dim 1 : vector<4x384xf32>, i32 -> vector<4x384xf32>
    %c20_161 = arith.constant 20 : index
    %c0_162 = arith.constant 0 : index
    %c0_163 = arith.constant 0 : index
    %476 = vector.load %arg4[%c20_161, %c0_162, %c0_163] : memref<36x4x1xf32, #tpu.memory_space<vmem>>, vector<1x4x1xf32>
    %477 = vector.shape_cast %476 : vector<1x4x1xf32> to vector<4x1xf32>
    %478 = vector.extract_strided_slice %475 {offsets = [0, 0], sizes = [1, 384], strides = [1, 1]} : vector<4x384xf32> to vector<1x384xf32>
    %479 = vector.broadcast %477 : vector<4x1xf32> to vector<4x384xf32>
    %480 = vector.broadcast %478 : vector<1x384xf32> to vector<4x384xf32>
    %481 = arith.mulf %479, %480 : vector<4x384xf32>
    %482 = arith.addf %474, %481 : vector<4x384xf32>
    %c21_164 = arith.constant 21 : index
    %c0_165 = arith.constant 0 : index
    %c0_166 = arith.constant 0 : index
    %483 = vector.load %arg4[%c21_164, %c0_165, %c0_166] : memref<36x4x1xf32, #tpu.memory_space<vmem>>, vector<1x4x1xf32>
    %484 = vector.shape_cast %483 : vector<1x4x1xf32> to vector<4x1xf32>
    %485 = vector.extract_strided_slice %475 {offsets = [1, 0], sizes = [1, 384], strides = [1, 1]} : vector<4x384xf32> to vector<1x384xf32>
    %486 = vector.broadcast %484 : vector<4x1xf32> to vector<4x384xf32>
    %487 = vector.broadcast %485 : vector<1x384xf32> to vector<4x384xf32>
    %488 = arith.mulf %486, %487 : vector<4x384xf32>
    %489 = arith.addf %482, %488 : vector<4x384xf32>
    %c22_167 = arith.constant 22 : index
    %c0_168 = arith.constant 0 : index
    %c0_169 = arith.constant 0 : index
    %490 = vector.load %arg4[%c22_167, %c0_168, %c0_169] : memref<36x4x1xf32, #tpu.memory_space<vmem>>, vector<1x4x1xf32>
    %491 = vector.shape_cast %490 : vector<1x4x1xf32> to vector<4x1xf32>
    %492 = vector.extract_strided_slice %475 {offsets = [2, 0], sizes = [1, 384], strides = [1, 1]} : vector<4x384xf32> to vector<1x384xf32>
    %493 = vector.broadcast %491 : vector<4x1xf32> to vector<4x384xf32>
    %494 = vector.broadcast %492 : vector<1x384xf32> to vector<4x384xf32>
    %495 = arith.mulf %493, %494 : vector<4x384xf32>
    %496 = arith.addf %489, %495 : vector<4x384xf32>
    %c23_170 = arith.constant 23 : index
    %c0_171 = arith.constant 0 : index
    %c0_172 = arith.constant 0 : index
    %497 = vector.load %arg4[%c23_170, %c0_171, %c0_172] : memref<36x4x1xf32, #tpu.memory_space<vmem>>, vector<1x4x1xf32>
    %498 = vector.shape_cast %497 : vector<1x4x1xf32> to vector<4x1xf32>
    %499 = vector.extract_strided_slice %475 {offsets = [3, 0], sizes = [1, 384], strides = [1, 1]} : vector<4x384xf32> to vector<1x384xf32>
    %500 = vector.broadcast %498 : vector<4x1xf32> to vector<4x384xf32>
    %501 = vector.broadcast %499 : vector<1x384xf32> to vector<4x384xf32>
    %502 = arith.mulf %500, %501 : vector<4x384xf32>
    %503 = arith.addf %496, %502 : vector<4x384xf32>
    %c367_i32_173 = arith.constant 367 : i32
    %504 = tpu.dynamic_rotate %329 by %c367_i32_173 dim 1 : vector<4x384xf32>, i32 -> vector<4x384xf32>
    %c24_174 = arith.constant 24 : index
    %c0_175 = arith.constant 0 : index
    %c0_176 = arith.constant 0 : index
    %505 = vector.load %arg4[%c24_174, %c0_175, %c0_176] : memref<36x4x1xf32, #tpu.memory_space<vmem>>, vector<1x4x1xf32>
    %506 = vector.shape_cast %505 : vector<1x4x1xf32> to vector<4x1xf32>
    %507 = vector.extract_strided_slice %504 {offsets = [0, 0], sizes = [1, 384], strides = [1, 1]} : vector<4x384xf32> to vector<1x384xf32>
    %508 = vector.broadcast %506 : vector<4x1xf32> to vector<4x384xf32>
    %509 = vector.broadcast %507 : vector<1x384xf32> to vector<4x384xf32>
    %510 = arith.mulf %508, %509 : vector<4x384xf32>
    %511 = arith.addf %503, %510 : vector<4x384xf32>
    %c25_177 = arith.constant 25 : index
    %c0_178 = arith.constant 0 : index
    %c0_179 = arith.constant 0 : index
    %512 = vector.load %arg4[%c25_177, %c0_178, %c0_179] : memref<36x4x1xf32, #tpu.memory_space<vmem>>, vector<1x4x1xf32>
    %513 = vector.shape_cast %512 : vector<1x4x1xf32> to vector<4x1xf32>
    %514 = vector.extract_strided_slice %504 {offsets = [1, 0], sizes = [1, 384], strides = [1, 1]} : vector<4x384xf32> to vector<1x384xf32>
    %515 = vector.broadcast %513 : vector<4x1xf32> to vector<4x384xf32>
    %516 = vector.broadcast %514 : vector<1x384xf32> to vector<4x384xf32>
    %517 = arith.mulf %515, %516 : vector<4x384xf32>
    %518 = arith.addf %511, %517 : vector<4x384xf32>
    %c26_180 = arith.constant 26 : index
    %c0_181 = arith.constant 0 : index
    %c0_182 = arith.constant 0 : index
    %519 = vector.load %arg4[%c26_180, %c0_181, %c0_182] : memref<36x4x1xf32, #tpu.memory_space<vmem>>, vector<1x4x1xf32>
    %520 = vector.shape_cast %519 : vector<1x4x1xf32> to vector<4x1xf32>
    %521 = vector.extract_strided_slice %504 {offsets = [2, 0], sizes = [1, 384], strides = [1, 1]} : vector<4x384xf32> to vector<1x384xf32>
    %522 = vector.broadcast %520 : vector<4x1xf32> to vector<4x384xf32>
    %523 = vector.broadcast %521 : vector<1x384xf32> to vector<4x384xf32>
    %524 = arith.mulf %522, %523 : vector<4x384xf32>
    %525 = arith.addf %518, %524 : vector<4x384xf32>
    %c27_183 = arith.constant 27 : index
    %c0_184 = arith.constant 0 : index
    %c0_185 = arith.constant 0 : index
    %526 = vector.load %arg4[%c27_183, %c0_184, %c0_185] : memref<36x4x1xf32, #tpu.memory_space<vmem>>, vector<1x4x1xf32>
    %527 = vector.shape_cast %526 : vector<1x4x1xf32> to vector<4x1xf32>
    %528 = vector.extract_strided_slice %504 {offsets = [3, 0], sizes = [1, 384], strides = [1, 1]} : vector<4x384xf32> to vector<1x384xf32>
    %529 = vector.broadcast %527 : vector<4x1xf32> to vector<4x384xf32>
    %530 = vector.broadcast %528 : vector<1x384xf32> to vector<4x384xf32>
    %531 = arith.mulf %529, %530 : vector<4x384xf32>
    %532 = arith.addf %525, %531 : vector<4x384xf32>
    %c366_i32_186 = arith.constant 366 : i32
    %533 = tpu.dynamic_rotate %329 by %c366_i32_186 dim 1 : vector<4x384xf32>, i32 -> vector<4x384xf32>
    %c28_187 = arith.constant 28 : index
    %c0_188 = arith.constant 0 : index
    %c0_189 = arith.constant 0 : index
    %534 = vector.load %arg4[%c28_187, %c0_188, %c0_189] : memref<36x4x1xf32, #tpu.memory_space<vmem>>, vector<1x4x1xf32>
    %535 = vector.shape_cast %534 : vector<1x4x1xf32> to vector<4x1xf32>
    %536 = vector.extract_strided_slice %533 {offsets = [0, 0], sizes = [1, 384], strides = [1, 1]} : vector<4x384xf32> to vector<1x384xf32>
    %537 = vector.broadcast %535 : vector<4x1xf32> to vector<4x384xf32>
    %538 = vector.broadcast %536 : vector<1x384xf32> to vector<4x384xf32>
    %539 = arith.mulf %537, %538 : vector<4x384xf32>
    %540 = arith.addf %532, %539 : vector<4x384xf32>
    %c29_190 = arith.constant 29 : index
    %c0_191 = arith.constant 0 : index
    %c0_192 = arith.constant 0 : index
    %541 = vector.load %arg4[%c29_190, %c0_191, %c0_192] : memref<36x4x1xf32, #tpu.memory_space<vmem>>, vector<1x4x1xf32>
    %542 = vector.shape_cast %541 : vector<1x4x1xf32> to vector<4x1xf32>
    %543 = vector.extract_strided_slice %533 {offsets = [1, 0], sizes = [1, 384], strides = [1, 1]} : vector<4x384xf32> to vector<1x384xf32>
    %544 = vector.broadcast %542 : vector<4x1xf32> to vector<4x384xf32>
    %545 = vector.broadcast %543 : vector<1x384xf32> to vector<4x384xf32>
    %546 = arith.mulf %544, %545 : vector<4x384xf32>
    %547 = arith.addf %540, %546 : vector<4x384xf32>
    %c30_193 = arith.constant 30 : index
    %c0_194 = arith.constant 0 : index
    %c0_195 = arith.constant 0 : index
    %548 = vector.load %arg4[%c30_193, %c0_194, %c0_195] : memref<36x4x1xf32, #tpu.memory_space<vmem>>, vector<1x4x1xf32>
    %549 = vector.shape_cast %548 : vector<1x4x1xf32> to vector<4x1xf32>
    %550 = vector.extract_strided_slice %533 {offsets = [2, 0], sizes = [1, 384], strides = [1, 1]} : vector<4x384xf32> to vector<1x384xf32>
    %551 = vector.broadcast %549 : vector<4x1xf32> to vector<4x384xf32>
    %552 = vector.broadcast %550 : vector<1x384xf32> to vector<4x384xf32>
    %553 = arith.mulf %551, %552 : vector<4x384xf32>
    %554 = arith.addf %547, %553 : vector<4x384xf32>
    %c31_196 = arith.constant 31 : index
    %c0_197 = arith.constant 0 : index
    %c0_198 = arith.constant 0 : index
    %555 = vector.load %arg4[%c31_196, %c0_197, %c0_198] : memref<36x4x1xf32, #tpu.memory_space<vmem>>, vector<1x4x1xf32>
    %556 = vector.shape_cast %555 : vector<1x4x1xf32> to vector<4x1xf32>
    %557 = vector.extract_strided_slice %533 {offsets = [3, 0], sizes = [1, 384], strides = [1, 1]} : vector<4x384xf32> to vector<1x384xf32>
    %558 = vector.broadcast %556 : vector<4x1xf32> to vector<4x384xf32>
    %559 = vector.broadcast %557 : vector<1x384xf32> to vector<4x384xf32>
    %560 = arith.mulf %558, %559 : vector<4x384xf32>
    %561 = arith.addf %554, %560 : vector<4x384xf32>
    %c365_i32_199 = arith.constant 365 : i32
    %562 = tpu.dynamic_rotate %329 by %c365_i32_199 dim 1 : vector<4x384xf32>, i32 -> vector<4x384xf32>
    %c32_200 = arith.constant 32 : index
    %c0_201 = arith.constant 0 : index
    %c0_202 = arith.constant 0 : index
    %563 = vector.load %arg4[%c32_200, %c0_201, %c0_202] : memref<36x4x1xf32, #tpu.memory_space<vmem>>, vector<1x4x1xf32>
    %564 = vector.shape_cast %563 : vector<1x4x1xf32> to vector<4x1xf32>
    %565 = vector.extract_strided_slice %562 {offsets = [0, 0], sizes = [1, 384], strides = [1, 1]} : vector<4x384xf32> to vector<1x384xf32>
    %566 = vector.broadcast %564 : vector<4x1xf32> to vector<4x384xf32>
    %567 = vector.broadcast %565 : vector<1x384xf32> to vector<4x384xf32>
    %568 = arith.mulf %566, %567 : vector<4x384xf32>
    %569 = arith.addf %561, %568 : vector<4x384xf32>
    %c33_203 = arith.constant 33 : index
    %c0_204 = arith.constant 0 : index
    %c0_205 = arith.constant 0 : index
    %570 = vector.load %arg4[%c33_203, %c0_204, %c0_205] : memref<36x4x1xf32, #tpu.memory_space<vmem>>, vector<1x4x1xf32>
    %571 = vector.shape_cast %570 : vector<1x4x1xf32> to vector<4x1xf32>
    %572 = vector.extract_strided_slice %562 {offsets = [1, 0], sizes = [1, 384], strides = [1, 1]} : vector<4x384xf32> to vector<1x384xf32>
    %573 = vector.broadcast %571 : vector<4x1xf32> to vector<4x384xf32>
    %574 = vector.broadcast %572 : vector<1x384xf32> to vector<4x384xf32>
    %575 = arith.mulf %573, %574 : vector<4x384xf32>
    %576 = arith.addf %569, %575 : vector<4x384xf32>
    %c34_206 = arith.constant 34 : index
    %c0_207 = arith.constant 0 : index
    %c0_208 = arith.constant 0 : index
    %577 = vector.load %arg4[%c34_206, %c0_207, %c0_208] : memref<36x4x1xf32, #tpu.memory_space<vmem>>, vector<1x4x1xf32>
    %578 = vector.shape_cast %577 : vector<1x4x1xf32> to vector<4x1xf32>
    %579 = vector.extract_strided_slice %562 {offsets = [2, 0], sizes = [1, 384], strides = [1, 1]} : vector<4x384xf32> to vector<1x384xf32>
    %580 = vector.broadcast %578 : vector<4x1xf32> to vector<4x384xf32>
    %581 = vector.broadcast %579 : vector<1x384xf32> to vector<4x384xf32>
    %582 = arith.mulf %580, %581 : vector<4x384xf32>
    %583 = arith.addf %576, %582 : vector<4x384xf32>
    %c35_209 = arith.constant 35 : index
    %c0_210 = arith.constant 0 : index
    %c0_211 = arith.constant 0 : index
    %584 = vector.load %arg4[%c35_209, %c0_210, %c0_211] : memref<36x4x1xf32, #tpu.memory_space<vmem>>, vector<1x4x1xf32>
    %585 = vector.shape_cast %584 : vector<1x4x1xf32> to vector<4x1xf32>
    %586 = vector.extract_strided_slice %562 {offsets = [3, 0], sizes = [1, 384], strides = [1, 1]} : vector<4x384xf32> to vector<1x384xf32>
    %587 = vector.broadcast %585 : vector<4x1xf32> to vector<4x384xf32>
    %588 = vector.broadcast %586 : vector<1x384xf32> to vector<4x384xf32>
    %589 = arith.mulf %587, %588 : vector<4x384xf32>
    %590 = arith.addf %583, %589 : vector<4x384xf32>
    %591 = vector.broadcast %2 : vector<1x384xf32> to vector<4x384xf32>
    %592 = arith.mulf %590, %591 : vector<4x384xf32>
    %cst_212 = arith.constant dense<0.000000e+00> : vector<4xf32>
    %593 = vector.multi_reduction <add>, %592, %cst_212 [1] : vector<4x384xf32> to vector<4xf32>
    %594 = vector.shape_cast %593 : vector<4xf32> to vector<4x1xf32>
    %cst_213 = arith.constant 3.906250e-03 : f32
    %595 = vector.broadcast %cst_213 : f32 to vector<4x1xf32>
    %596 = arith.mulf %594, %595 : vector<4x1xf32>
    %597 = vector.broadcast %596 : vector<4x1xf32> to vector<4x384xf32>
    %598 = arith.subf %590, %597 : vector<4x384xf32>
    %599 = arith.mulf %598, %598 : vector<4x384xf32>
    %600 = vector.broadcast %2 : vector<1x384xf32> to vector<4x384xf32>
    %601 = arith.mulf %599, %600 : vector<4x384xf32>
    %cst_214 = arith.constant dense<0.000000e+00> : vector<4xf32>
    %602 = vector.multi_reduction <add>, %601, %cst_214 [1] : vector<4x384xf32> to vector<4xf32>
    %603 = vector.shape_cast %602 : vector<4xf32> to vector<4x1xf32>
    %cst_215 = arith.constant 3.906250e-03 : f32
    %604 = vector.broadcast %cst_215 : f32 to vector<4x1xf32>
    %605 = arith.mulf %603, %604 : vector<4x1xf32>
    %cst_216 = arith.constant 9.99999974E-6 : f32
    %606 = vector.broadcast %cst_216 : f32 to vector<4x1xf32>
    %607 = arith.addf %605, %606 : vector<4x1xf32>
    %608 = math.rsqrt %607 : vector<4x1xf32>
    %609 = vector.broadcast %608 : vector<4x1xf32> to vector<4x384xf32>
    %610 = arith.mulf %598, %609 : vector<4x384xf32>
    %611 = arith.addf %1, %610 : vector<4x384xf32>
    %c0_217 = arith.constant 0 : index
    %c0_218 = arith.constant 0 : index
    %c0_219 = arith.constant 0 : index
    %612 = vector.load %arg5[%c0_217, %c0_218, %c0_219] : memref<1x4x384xf32, #tpu.memory_space<vmem>>, vector<1x4x384xf32>
    %613 = vector.shape_cast %612 : vector<1x4x384xf32> to vector<4x384xf32>
    %614 = vector.shape_cast %611 : vector<4x384xf32> to vector<1x4x384xf32>
    tpu.vector_store %arg5[%c0_217, %c0_218, %c0_219], %614 {strides = array<i32>} : memref<1x4x384xf32, #tpu.memory_space<vmem>>, vector<1x4x384xf32>,
    return
  }
  func.func @transform_0(%arg0: i32) -> (i32, i32, i32) {
    %c0_i32 = arith.constant 0 : i32
    %c0_i32_0 = arith.constant 0 : i32
    %c0_i32_1 = arith.constant 0 : i32
    return %arg0, %c0_i32, %c0_i32_0 : i32, i32, i32
  }
  func.func @transform_1(%arg0: i32) -> (i32, i32) {
    %c0_i32 = arith.constant 0 : i32
    %c0_i32_0 = arith.constant 0 : i32
    %c0_i32_1 = arith.constant 0 : i32
    return %c0_i32, %c0_i32_0 : i32, i32
  }
  func.func @transform_2(%arg0: i32) -> (i32, i32, i32) {
    %c0_i32 = arith.constant 0 : i32
    %c0_i32_0 = arith.constant 0 : i32
    %c0_i32_1 = arith.constant 0 : i32
    %c0_i32_2 = arith.constant 0 : i32
    return %c0_i32, %c0_i32_0, %c0_i32_1 : i32, i32, i32
  }
  func.func @transform_3(%arg0: i32) -> (i32, i32, i32) {
    %c0_i32 = arith.constant 0 : i32
    %c0_i32_0 = arith.constant 0 : i32
    %c0_i32_1 = arith.constant 0 : i32
    %c0_i32_2 = arith.constant 0 : i32
    return %c0_i32, %c0_i32_0, %c0_i32_1 : i32, i32, i32
  }
  func.func @transform_4(%arg0: i32) -> (i32, i32, i32) {
    %c0_i32 = arith.constant 0 : i32
    %c0_i32_0 = arith.constant 0 : i32
    %c0_i32_1 = arith.constant 0 : i32
    return %arg0, %c0_i32, %c0_i32_0 : i32, i32, i32
  }
}

</mosaic_0001>

<llo_original>
// kernel: tpu_custom_call.1
$region0: #{tpu_custom_call.1}
  #allocation0 [shape = 'u32[]', space=smem, size = 0x4, offset = 0x4, fixed_abs, tag = 'smem constant byte address 0x4 - core index']
  #allocation1 [shape = 'u32[72,128]{1,0:T(1,128)}', space=vmem, size = 0x9000, scoped, tag = 'internal scratch']
  %s0 = inlined_call_operand.vmem [shape: f32[2,4,384], index: 0, kind: input, shape index: {}]
  %s1 = inlined_call_operand.vmem [shape: f32[5,384], index: 1, kind: input, shape index: {}]
  %s2 = inlined_call_operand.vmem [shape: f32[36,4,1], index: 2, kind: input, shape index: {}]
  %s3 = inlined_call_operand.vmem [shape: f32[36,4,1], index: 3, kind: input, shape index: {}]
  %s4 = inlined_call_operand.hbm [shape: f32[2,4,384], index: 4, kind: output, shape index: {}]
  %s5 = sld [smem:[#allocation0]]
  $region49: #{tpu_custom_call.1} parent=0
    _
  %s7 = ssub.s32 1, %s5
  %s8 = scalar_select 0, %s7, %s5
  $region1: #{tpu_custom_call.1} parent=0
    #allocation2 [shape = 'u8[12288]{0}', space=vmem, size = 0x3000, scoped, tag = 'output window, operand 0']
    #allocation3 [shape = 's32[2]{0}', space=sflag, size = 0x8, scoped, tag = 'scoped memory for tpu_custom_call.1']
    %9 = vsyncpa [#allocation3], 0
    %s10 = scalar_lea.sflag [#allocation3], 1
    %11 = vsyncpa %s10, 0
    loop: start=0, step=1, limit=4
    $region2: #{tpu_custom_call.1} parent=1 // loop_pre_header
      _
    $region3: #{tpu_custom_call.1} parent=1 // loop_header
      %s13 = sphi 0, %s17
      %p14 = scmp.ge.s32.totalorder %s13, 4
      %s23 = sphi 0, %s25
      %s26 = sphi 0, %s23
      %s27 = sphi 0, %s26
      %s43 = sphi 0, %s27
      %s47 = sphi 0, %s47
      %s49 = sphi 0, %s47
      %s50 = sphi 0, %s49
      %s64 = sphi 0, %s50
      %s68 = sphi 0, %s68
      %s70 = sphi 0, %s68
      %s71 = sphi 0, %s70
      %s85 = sphi 0, %s71
      %s89 = sphi 0, %s89
      %s91 = sphi 0, %s89
      %s92 = sphi 0, %s91
      %s106 = sphi 0, %s92
      %s112 = sphi 0, %s114
      %s115 = sphi 0, %s112
      %s116 = sphi 0, %s115
      %s132 = sphi 0, %s116
    $region4: #{tpu_custom_call.1} parent=1 // loop_header_branch
      %16 = sbr.rel (%p14) target = $region8
    $region5: #{tpu_custom_call.1} parent=1 // loop_body
      %s18 = ssub.s32 %s13, 1
      %s19 = ssub.s32 %s13, 2
      %s20 = sadd.s32 %s13, 1
      %s21 = ssub.s32 %s13, %s20
      %p22 = scmp.eq.s32.totalorder %s21, 0
      %s24 = sadd.s32 %s23, 1
      %s25 = scalar_select %p22, %s23, %s24
      %p28 = pneg %p22
      %p29 = scmp.eq.s32.totalorder %s13, 1
      %p30 = por %p28, %p29
      %p31 = scmp.ne.s32.totalorder %s23, %s26
      %p32 = scmp.eq.s32.totalorder %s13, 0
      %p33 = por %p31, %p32
      %p34 = scmp.ne.s32.totalorder %s23, %s26
      %p35 = scmp.eq.s32.totalorder %s18, 1
      %p36 = por %p34, %p35
      %p37 = scmp.ne.s32.totalorder %s26, %s27
      %p38 = scmp.eq.s32.totalorder %s18, 0
      %p39 = por %p37, %p38
      %p40 = scmp.ne.s32.totalorder %s26, %s27
      %p41 = scmp.eq.s32.totalorder %s19, 1
      %p42 = por %p40, %p41
      %p44 = scmp.ne.s32.totalorder %s27, %s43
      %p45 = scmp.eq.s32.totalorder %s19, 0
      %p46 = por %p44, %p45
      %s48 = sadd.s32 %s47, 1
      %p51 = scmp.eq.s32.totalorder %s13, 1
      %p52 = scmp.ne.s32.totalorder %s47, %s49
      %p53 = scmp.eq.s32.totalorder %s13, 0
      %p54 = por %p52, %p53
      %p55 = scmp.ne.s32.totalorder %s47, %s49
      %p56 = scmp.eq.s32.totalorder %s18, 1
      %p57 = por %p55, %p56
      %p58 = scmp.ne.s32.totalorder %s49, %s50
      %p59 = scmp.eq.s32.totalorder %s18, 0
      %p60 = por %p58, %p59
      %p61 = scmp.ne.s32.totalorder %s49, %s50
      %p62 = scmp.eq.s32.totalorder %s19, 1
      %p63 = por %p61, %p62
      %p65 = scmp.ne.s32.totalorder %s50, %s64
      %p66 = scmp.eq.s32.totalorder %s19, 0
      %p67 = por %p65, %p66
      %s69 = sadd.s32 %s68, 1
      %p72 = scmp.eq.s32.totalorder %s13, 1
      %p73 = scmp.ne.s32.totalorder %s68, %s70
      %p74 = scmp.eq.s32.totalorder %s13, 0
      %p75 = por %p73, %p74
      %p76 = scmp.ne.s32.totalorder %s68, %s70
      %p77 = scmp.eq.s32.totalorder %s18, 1
      %p78 = por %p76, %p77
      %p79 = scmp.ne.s32.totalorder %s70, %s71
      %p80 = scmp.eq.s32.totalorder %s18, 0
      %p81 = por %p79, %p80
      %p82 = scmp.ne.s32.totalorder %s70, %s71
      %p83 = scmp.eq.s32.totalorder %s19, 1
      %p84 = por %p82, %p83
      %p86 = scmp.ne.s32.totalorder %s71, %s85
      %p87 = scmp.eq.s32.totalorder %s19, 0
      %p88 = por %p86, %p87
      %s90 = sadd.s32 %s89, 1
      %p93 = scmp.eq.s32.totalorder %s13, 1
      %p94 = scmp.ne.s32.totalorder %s89, %s91
      %p95 = scmp.eq.s32.totalorder %s13, 0
      %p96 = por %p94, %p95
      %p97 = scmp.ne.s32.totalorder %s89, %s91
      %p98 = scmp.eq.s32.totalorder %s18, 1
      %p99 = por %p97, %p98
      %p100 = scmp.ne.s32.totalorder %s91, %s92
      %p101 = scmp.eq.s32.totalorder %s18, 0
      %p102 = por %p100, %p101
      %p103 = scmp.ne.s32.totalorder %s91, %s92
      %p104 = scmp.eq.s32.totalorder %s19, 1
      %p105 = por %p103, %p104
      %p107 = scmp.ne.s32.totalorder %s92, %s106
      %p108 = scmp.eq.s32.totalorder %s19, 0
      %p109 = por %p107, %p108
      %s110 = ssub.s32 %s13, %s20
      %p111 = scmp.eq.s32.totalorder %s110, 0
      %s113 = sadd.s32 %s112, 1
      %s114 = scalar_select %p111, %s112, %s113
      %p117 = pneg %p111
      %p118 = scmp.eq.s32.totalorder %s13, 1
      %p119 = por %p117, %p118
      %p120 = scmp.ne.s32.totalorder %s112, %s115
      %p121 = scmp.eq.s32.totalorder %s13, 0
      %p122 = por %p120, %p121
      %p123 = scmp.ne.s32.totalorder %s112, %s115
      %p124 = scmp.eq.s32.totalorder %s18, 1
      %p125 = por %p123, %p124
      %p126 = scmp.ne.s32.totalorder %s115, %s116
      %p127 = scmp.eq.s32.totalorder %s18, 0
      %p128 = por %p126, %p127
      %p129 = scmp.ne.s32.totalorder %s115, %s116
      %p130 = scmp.eq.s32.totalorder %s19, 1
      %p131 = por %p129, %p130
      %p133 = scmp.ne.s32.totalorder %s116, %s132
      %p134 = scmp.eq.s32.totalorder %s19, 0
      %p135 = por %p133, %p134
      %p136 = scmp.le.s32.totalorder 1, %s13
      %p137 = scmp.lt.s32.totalorder %s13, 3
      %p138 = pnand %p136, %p137
      %p139 = pneg %p138
      // Predicated region
      $region9: #{tpu_custom_call.1} parent=5 // pred_check
        _
      $region10: #{tpu_custom_call.1} parent=5 // pred_check_branch
        %141 = sbr.rel (%p138) target = $region12
      $region11: #{tpu_custom_call.1} parent=5 // pred_region
        %s142 = ssub.s32 %s13, 1
        // Predicated region
        $region13: #{tpu_custom_call.1} parent=11 // pred_check
          %p143 = pneg %p60
        $region14: #{tpu_custom_call.1} parent=11 // pred_check_branch
          %145 = sbr.rel (%p143) target = $region16
        $region15: #{tpu_custom_call.1} parent=11 // pred_region
          _
        $region16: #{tpu_custom_call.1} parent=11 // pred_fallthru
          _
        // Predicated region
        $region17: #{tpu_custom_call.1} parent=11 // pred_check
          %p146 = pneg %p81
        $region18: #{tpu_custom_call.1} parent=11 // pred_check_branch
          %148 = sbr.rel (%p146) target = $region20
        $region19: #{tpu_custom_call.1} parent=11 // pred_region
          _
        $region20: #{tpu_custom_call.1} parent=11 // pred_fallthru
          _
        // Predicated region
        $region21: #{tpu_custom_call.1} parent=11 // pred_check
          %p149 = pneg %p102
        $region22: #{tpu_custom_call.1} parent=11 // pred_check_branch
          %151 = sbr.rel (%p149) target = $region24
        $region23: #{tpu_custom_call.1} parent=11 // pred_region
          _
        $region24: #{tpu_custom_call.1} parent=11 // pred_fallthru
          _
      $region12: #{tpu_custom_call.1} parent=5 // pred_fallthru
        _
      %p152 = scmp.lt.s32.totalorder %s13, 2
      // Predicated region
      $region25: #{tpu_custom_call.1} parent=5 // pred_check
        %p153 = pneg %p152
      $region26: #{tpu_custom_call.1} parent=5 // pred_check_branch
        %155 = sbr.rel (%p153) target = $region28
      $region27: #{tpu_custom_call.1} parent=5 // pred_region
        // Predicated region
        $region29: #{tpu_custom_call.1} parent=27 // pred_check
          %p156 = pneg %p33
        $region30: #{tpu_custom_call.1} parent=27 // pred_check_branch
          %158 = sbr.rel (%p156) target = $region32
        $region31: #{tpu_custom_call.1} parent=27 // pred_region
          %p159 = scmp.lt.s32.totalorder %s13, 1
          %s160 = scalar_select %p159, %s13, 1
          %s161 = smul.addr %s160, 3
          %s162 = smul.addr %s161, 4
          %s163 = scalar_lea.vmem %s0, %s162
        $region32: #{tpu_custom_call.1} parent=27 // pred_fallthru
          _
      $region28: #{tpu_custom_call.1} parent=5 // pred_fallthru
        _
      %p164 = scmp.le.s32.totalorder 1, %s13
      %p165 = scmp.lt.s32.totalorder %s13, 3
      %p166 = pnand %p164, %p165
      %p167 = pneg %p166
      // Predicated region
      $region33: #{tpu_custom_call.1} parent=5 // pred_check
        _
      $region34: #{tpu_custom_call.1} parent=5 // pred_check_branch
        %169 = sbr.rel (%p166) target = $region36
      $region35: #{tpu_custom_call.1} parent=5 // pred_region
        %s170 = ssub.s32 %s13, 1
        %p171 = scmp.lt.s32.totalorder %s18, 1
        %s172 = scalar_select %p171, %s18, 1
        %s173 = smul.addr %s172, 3
        %s174 = smul.addr %s173, 4
        %s175 = scalar_lea.vmem %s0, %s174
        %p176 = pneg %p39
        %p177 = pneg %p36
        %p178 = pneg %p60
        %p179 = pneg %p57
        %p180 = pneg %p81
        %p181 = pneg %p78
        %p182 = pneg %p102
        %p183 = pneg %p99
        %p184 = pneg %p128
        %p185 = pneg %p125
        %s186 = sand.u32 %s115, 1
        %s187 = scalar_lea.sflag [#allocation3], %s186
        %s188 = sand.u32 %s115, 1
        %s189 = smul.addr %s188, 12
        %s190 = scalar_lea.vmem [#allocation2], %s189
        %p191 = scmp.lt.s32.totalorder %s18, 1
        %s192 = scalar_select %p191, %s18, 1
        %s193 = smul.addr %s192, 3
        %s194 = smul.addr %s193, 4
        %s195 = scalar_lea.vmem %s0, %s194
        %v196 = vld [vmem:[%s195] sm:$0xff]
        %v197 = vld [vmem:[%s195 + $0x8] sm:$0xf]
        %v198 = vld [vmem:[%s1] ss:$8 sm:$0x7]
        %s199 = scalar_lea.vmem %s1, 1
        %v200 = vld [vmem:[%s199] ss:$8 sm:$0x7]
        %s201 = scalar_lea.vmem %s1, 2
        %v202 = vld [vmem:[%s201] ss:$8 sm:$0x7]
        %s203 = scalar_lea.vmem %s1, 3
        %v204 = vld [vmem:[%s203] ss:$8 sm:$0x7]
        %s205 = scalar_lea.vmem %s1, 4
        %v206 = vld [vmem:[%s205] ss:$8 sm:$0x7]
        %209 = vst [vmem:[#allocation1] ss:$2 sm:$0xff] %v196
        %s210 = scalar_lea.vmem [#allocation1], 16
        %211 = vst [vmem:[%s210] ss:$2 sm:$0xff] %v197
        %v212 = vld.sshfl [vmem:[#allocation1] sm:$0xff pattern:$0x75316420]
        %v213 = vld.sshfl [vmem:[#allocation1 + $0x8] sm:$0xff pattern:$0x75316420]
        %v214 = vld.sshfl [vmem:[#allocation1 + $0x10] sm:$0xff pattern:$0x75316420]
        %218 = vrot.lane.b32.xlu0 %v212, 126
        %v219 = vpop.permute.xlu0 %218
        %220 = vrot.lane.b32.xlu0 %v213, 126
        %v221 = vpop.permute.xlu0 %220
        %222 = vrot.lane.b32.xlu0 %v214, 126
        %v223 = vpop.permute.xlu0 %222
        %v224 = vlaneseq
        %v225 = vand.u32 %v224, 127
        %vm226 = vcmp.lt.s32.totalorder %v225, 126
        %v227 = vsel %vm226, %v221, %v223
        %v228 = vsel %vm226, %v219, %v221
        %v229 = vsel %vm226, %v223, %v219
        %230 = vst [vmem:[#allocation1] ss:$2 sm:$0xff] %v196
        %s231 = scalar_lea.vmem [#allocation1], 16
        %232 = vst [vmem:[%s231] ss:$2 sm:$0xff] %v197
        %v233 = vld.sshfl [vmem:[#allocation1] sm:$0xff pattern:$0x75316420]
        %v234 = vld.sshfl [vmem:[#allocation1 + $0x8] sm:$0xff pattern:$0x75316420]
        %v235 = vld.sshfl [vmem:[#allocation1 + $0x10] sm:$0xff pattern:$0x75316420]
        %v239 = vsub.f32 %v228, %v233
        %v240 = vsub.f32 %v227, %v234
        %v241 = vsub.f32 %v229, %v235
        %v243 = vperm.slane %v200, 0
        %v244 = vperm.slane %v200, 1
        %v245 = vperm.slane %v200, 2
        %v249 = vmul.f32 %v243, %v239
        %v250 = vmul.f32 %v244, %v240
        %v251 = vmul.f32 %v245, %v241
        %v254 = vrot.slane %v250, 4
        %vm255 = vcmask 1043456
        %v256 = vsel %vm255, %v249, %v254
        %v258 = vadd.f32 %v196, %v256
        %v259 = vadd.f32 %v197, %v251
        %262 = vst [vmem:[#allocation1] ss:$2 sm:$0xff] %v258
        %s263 = scalar_lea.vmem [#allocation1], 16
        %264 = vst [vmem:[%s263] ss:$2 sm:$0xff] %v259
        %v265 = vld.sshfl [vmem:[#allocation1] sm:$0xff pattern:$0x75316420]
        %v266 = vld.sshfl [vmem:[#allocation1 + $0x8] sm:$0xff pattern:$0x75316420]
        %v267 = vld.sshfl [vmem:[#allocation1 + $0x10] sm:$0xff pattern:$0x75316420]
        %271 = vrot.lane.b32.xlu0 %v265, 2
        %v272 = vpop.permute.xlu0 %271
        %273 = vrot.lane.b32.xlu0 %v266, 2
        %v274 = vpop.permute.xlu0 %273
        %275 = vrot.lane.b32.xlu0 %v267, 2
        %v276 = vpop.permute.xlu0 %275
        %vm277 = vcmp.lt.s32.totalorder %v225, 2
        %v278 = vsel %vm277, %v274, %v276
        %v279 = vsel %vm277, %v272, %v274
        %v280 = vsel %vm277, %v276, %v272
        %281 = vst [vmem:[#allocation1] ss:$2 sm:$0xff] %v258
        %s282 = scalar_lea.vmem [#allocation1], 16
        %283 = vst [vmem:[%s282] ss:$2 sm:$0xff] %v259
        %v284 = vld.sshfl [vmem:[#allocation1] sm:$0xff pattern:$0x75316420]
        %v285 = vld.sshfl [vmem:[#allocation1 + $0x8] sm:$0xff pattern:$0x75316420]
        %v286 = vld.sshfl [vmem:[#allocation1 + $0x10] sm:$0xff pattern:$0x75316420]
        %v290 = vsub.f32 %v280, %v284
        %v291 = vsub.f32 %v279, %v285
        %v292 = vsub.f32 %v278, %v286
        %v294 = vperm.slane %v202, 0
        %v295 = vperm.slane %v202, 1
        %v296 = vperm.slane %v202, 2
        %v300 = vmul.f32 %v294, %v290
        %v301 = vmul.f32 %v295, %v291
        %v302 = vmul.f32 %v296, %v292
        %v305 = vrot.slane %v301, 4
        %v306 = vsel %vm255, %v300, %v305
        %v308 = vadd.f32 %v258, %v306
        %v309 = vadd.f32 %v259, %v302
        %312 = vst [vmem:[#allocation1] ss:$2 sm:$0xff] %v308
        %s313 = scalar_lea.vmem [#allocation1], 16
        %314 = vst [vmem:[%s313] ss:$2 sm:$0xff] %v309
        %v315 = vld.sshfl [vmem:[#allocation1] sm:$0xff pattern:$0x75316420]
        %v316 = vld.sshfl [vmem:[#allocation1 + $0x8] sm:$0xff pattern:$0x75316420]
        %v317 = vld.sshfl [vmem:[#allocation1 + $0x10] sm:$0xff pattern:$0x75316420]
        %321 = vrot.lane.b32.xlu0 %v315, 92
        %v322 = vpop.permute.xlu0 %321
        %323 = vrot.lane.b32.xlu0 %v316, 92
        %v324 = vpop.permute.xlu0 %323
        %325 = vrot.lane.b32.xlu0 %v317, 92
        %v326 = vpop.permute.xlu0 %325
        %vm327 = vcmp.lt.s32.totalorder %v225, 92
        %v328 = vsel %vm327, %v324, %v326
        %v329 = vsel %vm327, %v322, %v324
        %v330 = vsel %vm327, %v326, %v322
        %331 = vst [vmem:[#allocation1] ss:$2 sm:$0xff] %v308
        %s332 = scalar_lea.vmem [#allocation1], 16
        %333 = vst [vmem:[%s332] ss:$2 sm:$0xff] %v309
        %v334 = vld.sshfl [vmem:[#allocation1] sm:$0xff pattern:$0x75316420]
        %v335 = vld.sshfl [vmem:[#allocation1 + $0x8] sm:$0xff pattern:$0x75316420]
        %v336 = vld.sshfl [vmem:[#allocation1 + $0x10] sm:$0xff pattern:$0x75316420]
        %v340 = vsub.f32 %v329, %v334
        %v341 = vsub.f32 %v328, %v335
        %v342 = vsub.f32 %v330, %v336
        %v344 = vperm.slane %v204, 0
        %v345 = vperm.slane %v204, 1
        %v346 = vperm.slane %v204, 2
        %v350 = vmul.f32 %v344, %v340
        %v351 = vmul.f32 %v345, %v341
        %v352 = vmul.f32 %v346, %v342
        %v355 = vrot.slane %v351, 4
        %v356 = vsel %vm255, %v350, %v355
        %v358 = vadd.f32 %v308, %v356
        %v359 = vadd.f32 %v309, %v352
        %362 = vst [vmem:[#allocation1] ss:$2 sm:$0xff] %v358
        %s363 = scalar_lea.vmem [#allocation1], 16
        %364 = vst [vmem:[%s363] ss:$2 sm:$0xff] %v359
        %v365 = vld.sshfl [vmem:[#allocation1] sm:$0xff pattern:$0x75316420]
        %v366 = vld.sshfl [vmem:[#allocation1 + $0x8] sm:$0xff pattern:$0x75316420]
        %v367 = vld.sshfl [vmem:[#allocation1 + $0x10] sm:$0xff pattern:$0x75316420]
        %371 = vrot.lane.b32.xlu0 %v365, 36
        %v372 = vpop.permute.xlu0 %371
        %373 = vrot.lane.b32.xlu0 %v366, 36
        %v374 = vpop.permute.xlu0 %373
        %375 = vrot.lane.b32.xlu0 %v367, 36
        %v376 = vpop.permute.xlu0 %375
        %vm377 = vcmp.lt.s32.totalorder %v225, 36
        %v378 = vsel %vm377, %v374, %v376
        %v379 = vsel %vm377, %v372, %v374
        %v380 = vsel %vm377, %v376, %v372
        %381 = vst [vmem:[#allocation1] ss:$2 sm:$0xff] %v358
        %s382 = scalar_lea.vmem [#allocation1], 16
        %383 = vst [vmem:[%s382] ss:$2 sm:$0xff] %v359
        %v384 = vld.sshfl [vmem:[#allocation1] sm:$0xff pattern:$0x75316420]
        %v385 = vld.sshfl [vmem:[#allocation1 + $0x8] sm:$0xff pattern:$0x75316420]
        %v386 = vld.sshfl [vmem:[#allocation1 + $0x10] sm:$0xff pattern:$0x75316420]
        %v390 = vsub.f32 %v380, %v384
        %v391 = vsub.f32 %v379, %v385
        %v392 = vsub.f32 %v378, %v386
        %v394 = vperm.slane %v206, 0
        %v395 = vperm.slane %v206, 1
        %v396 = vperm.slane %v206, 2
        %v400 = vmul.f32 %v394, %v390
        %v401 = vmul.f32 %v395, %v391
        %v402 = vmul.f32 %v396, %v392
        %v405 = vrot.slane %v401, 4
        %v406 = vsel %vm255, %v400, %v405
        %v408 = vadd.f32 %v358, %v406
        %v409 = vadd.f32 %v359, %v402
        %412 = vst [vmem:[#allocation1] ss:$2 sm:$0xff] %v408
        %s413 = scalar_lea.vmem [#allocation1], 16
        %414 = vst [vmem:[%s413] ss:$2 sm:$0xff] %v409
        %v415 = vld.sshfl [vmem:[#allocation1] sm:$0xff pattern:$0x75316420]
        %v416 = vld.sshfl [vmem:[#allocation1 + $0x8] sm:$0xff pattern:$0x75316420]
        %v417 = vld.sshfl [vmem:[#allocation1 + $0x10] sm:$0xff pattern:$0x75316420]
        %421 = vrot.lane.b32.xlu0 %v415, 19
        %v422 = vpop.permute.xlu0 %421
        %423 = vrot.lane.b32.xlu0 %v416, 19
        %v424 = vpop.permute.xlu0 %423
        %425 = vrot.lane.b32.xlu0 %v417, 19
        %v426 = vpop.permute.xlu0 %425
        %vm427 = vcmp.lt.s32.totalorder %v225, 19
        %v428 = vsel %vm427, %v424, %v426
        %v429 = vsel %vm427, %v422, %v424
        %v430 = vsel %vm427, %v426, %v422
        %v431 = vld [vmem:[%s2] sm:$0xf]
        %433 = vset.pattern.permute.xlu0 0
        %434 = vperm.xlu0 %433, %v431
        %v435 = vpop.permute.xlu0 %434
        %v437 = vperm.slane %v430, 0
        %v438 = vperm.slane %v429, 0
        %v439 = vperm.slane %v428, 0
        %v440 = vmul.f32 %v435, %v437
        %v441 = vmul.f32 %v435, %v438
        %v442 = vmul.f32 %v435, %v439
        %v443 = vadd.f32 %v440, 0.0
        %v444 = vadd.f32 %v441, 0.0
        %v445 = vadd.f32 %v442, 0.0
        %s446 = scalar_lea.vmem %s2, 4
        %v447 = vld [vmem:[%s446] sm:$0xf]
        %449 = vset.pattern.permute.xlu0 0
        %450 = vperm.xlu0 %449, %v447
        %v451 = vpop.permute.xlu0 %450
        %v453 = vperm.slane %v430, 1
        %v454 = vperm.slane %v429, 1
        %v455 = vperm.slane %v428, 1
        %v456 = vmul.f32 %v451, %v453
        %v457 = vmul.f32 %v451, %v454
        %v458 = vmul.f32 %v451, %v455
        %v459 = vadd.f32 %v443, %v456
        %v460 = vadd.f32 %v444, %v457
        %v461 = vadd.f32 %v445, %v458
        %s462 = scalar_lea.vmem %s2, 8
        %v463 = vld [vmem:[%s462] sm:$0xf]
        %465 = vset.pattern.permute.xlu0 0
        %466 = vperm.xlu0 %465, %v463
        %v467 = vpop.permute.xlu0 %466
        %v469 = vperm.slane %v430, 2
        %v470 = vperm.slane %v429, 2
        %v471 = vperm.slane %v428, 2
        %v472 = vmul.f32 %v467, %v469
        %v473 = vmul.f32 %v467, %v470
        %v474 = vmul.f32 %v467, %v471
        %v475 = vadd.f32 %v459, %v472
        %v476 = vadd.f32 %v460, %v473
        %v477 = vadd.f32 %v461, %v474
        %s478 = scalar_lea.vmem %s2, 12
        %v479 = vld [vmem:[%s478] sm:$0xf]
        %481 = vset.pattern.permute.xlu0 0
        %482 = vperm.xlu0 %481, %v479
        %v483 = vpop.permute.xlu0 %482
        %v485 = vperm.slane %v430, 3
        %v486 = vperm.slane %v429, 3
        %v487 = vperm.slane %v428, 3
        %v488 = vmul.f32 %v483, %v485
        %v489 = vmul.f32 %v483, %v486
        %v490 = vmul.f32 %v483, %v487
        %v491 = vadd.f32 %v475, %v488
        %v492 = vadd.f32 %v476, %v489
        %v493 = vadd.f32 %v477, %v490
        %494 = vst [vmem:[#allocation1] ss:$2 sm:$0xff] %v408
        %s495 = scalar_lea.vmem [#allocation1], 16
        %496 = vst [vmem:[%s495] ss:$2 sm:$0xff] %v409
        %v497 = vld.sshfl [vmem:[#allocation1] sm:$0xff pattern:$0x75316420]
        %v498 = vld.sshfl [vmem:[#allocation1 + $0x8] sm:$0xff pattern:$0x75316420]
        %v499 = vld.sshfl [vmem:[#allocation1 + $0x10] sm:$0xff pattern:$0x75316420]
        %503 = vrot.lane.b32.xlu0 %v497, 18
        %v504 = vpop.permute.xlu0 %503
        %505 = vrot.lane.b32.xlu0 %v498, 18
        %v506 = vpop.permute.xlu0 %505
        %507 = vrot.lane.b32.xlu0 %v499, 18
        %v508 = vpop.permute.xlu0 %507
        %vm509 = vcmp.lt.s32.totalorder %v225, 18
        %v510 = vsel %vm509, %v506, %v508
        %v511 = vsel %vm509, %v504, %v506
        %v512 = vsel %vm509, %v508, %v504
        %s513 = scalar_lea.vmem %s2, 16
        %v514 = vld [vmem:[%s513] sm:$0xf]
        %516 = vset.pattern.permute.xlu0 0
        %517 = vperm.xlu0 %516, %v514
        %v518 = vpop.permute.xlu0 %517
        %v520 = vperm.slane %v512, 0
        %v521 = vperm.slane %v511, 0
        %v522 = vperm.slane %v510, 0
        %v523 = vmul.f32 %v518, %v520
        %v524 = vmul.f32 %v518, %v521
        %v525 = vmul.f32 %v518, %v522
        %v526 = vadd.f32 %v491, %v523
        %v527 = vadd.f32 %v492, %v524
        %v528 = vadd.f32 %v493, %v525
        %s529 = scalar_lea.vmem %s2, 20
        %v530 = vld [vmem:[%s529] sm:$0xf]
        %532 = vset.pattern.permute.xlu0 0
        %533 = vperm.xlu0 %532, %v530
        %v534 = vpop.permute.xlu0 %533
        %v536 = vperm.slane %v512, 1
        %v537 = vperm.slane %v511, 1
        %v538 = vperm.slane %v510, 1
        %v539 = vmul.f32 %v534, %v536
        %v540 = vmul.f32 %v534, %v537
        %v541 = vmul.f32 %v534, %v538
        %v542 = vadd.f32 %v526, %v539
        %v543 = vadd.f32 %v527, %v540
        %v544 = vadd.f32 %v528, %v541
        %s545 = scalar_lea.vmem %s2, 24
        %v546 = vld [vmem:[%s545] sm:$0xf]
        %548 = vset.pattern.permute.xlu0 0
        %549 = vperm.xlu0 %548, %v546
        %v550 = vpop.permute.xlu0 %549
        %v552 = vperm.slane %v512, 2
        %v553 = vperm.slane %v511, 2
        %v554 = vperm.slane %v510, 2
        %v555 = vmul.f32 %v550, %v552
        %v556 = vmul.f32 %v550, %v553
        %v557 = vmul.f32 %v550, %v554
        %v558 = vadd.f32 %v542, %v555
        %v559 = vadd.f32 %v543, %v556
        %v560 = vadd.f32 %v544, %v557
        %s561 = scalar_lea.vmem %s2, 28
        %v562 = vld [vmem:[%s561] sm:$0xf]
        %564 = vset.pattern.permute.xlu0 0
        %565 = vperm.xlu0 %564, %v562
        %v566 = vpop.permute.xlu0 %565
        %v568 = vperm.slane %v512, 3
        %v569 = vperm.slane %v511, 3
        %v570 = vperm.slane %v510, 3
        %v571 = vmul.f32 %v566, %v568
        %v572 = vmul.f32 %v566, %v569
        %v573 = vmul.f32 %v566, %v570
        %v574 = vadd.f32 %v558, %v571
        %v575 = vadd.f32 %v559, %v572
        %v576 = vadd.f32 %v560, %v573
        %577 = vst [vmem:[#allocation1] ss:$2 sm:$0xff] %v408
        %s578 = scalar_lea.vmem [#allocation1], 16
        %579 = vst [vmem:[%s578] ss:$2 sm:$0xff] %v409
        %v580 = vld.sshfl [vmem:[#allocation1] sm:$0xff pattern:$0x75316420]
        %v581 = vld.sshfl [vmem:[#allocation1 + $0x8] sm:$0xff pattern:$0x75316420]
        %v582 = vld.sshfl [vmem:[#allocation1 + $0x10] sm:$0xff pattern:$0x75316420]
        %586 = vrot.lane.b32.xlu0 %v580, 17
        %v587 = vpop.permute.xlu0 %586
        %588 = vrot.lane.b32.xlu0 %v581, 17
        %v589 = vpop.permute.xlu0 %588
        %590 = vrot.lane.b32.xlu0 %v582, 17
        %v591 = vpop.permute.xlu0 %590
        %vm592 = vcmp.lt.s32.totalorder %v225, 17
        %v593 = vsel %vm592, %v589, %v591
        %v594 = vsel %vm592, %v587, %v589
        %v595 = vsel %vm592, %v591, %v587
        %s596 = scalar_lea.vmem %s2, 32
        %v597 = vld [vmem:[%s596] sm:$0xf]
        %599 = vset.pattern.permute.xlu0 0
        %600 = vperm.xlu0 %599, %v597
        %v601 = vpop.permute.xlu0 %600
        %v603 = vperm.slane %v595, 0
        %v604 = vperm.slane %v594, 0
        %v605 = vperm.slane %v593, 0
        %v606 = vmul.f32 %v601, %v603
        %v607 = vmul.f32 %v601, %v604
        %v608 = vmul.f32 %v601, %v605
        %v609 = vadd.f32 %v574, %v606
        %v610 = vadd.f32 %v575, %v607
        %v611 = vadd.f32 %v576, %v608
        %s612 = scalar_lea.vmem %s2, 36
        %v613 = vld [vmem:[%s612] sm:$0xf]
        %615 = vset.pattern.permute.xlu0 0
        %616 = vperm.xlu0 %615, %v613
        %v617 = vpop.permute.xlu0 %616
        %v619 = vperm.slane %v595, 1
        %v620 = vperm.slane %v594, 1
        %v621 = vperm.slane %v593, 1
        %v622 = vmul.f32 %v617, %v619
        %v623 = vmul.f32 %v617, %v620
        %v624 = vmul.f32 %v617, %v621
        %v625 = vadd.f32 %v609, %v622
        %v626 = vadd.f32 %v610, %v623
        %v627 = vadd.f32 %v611, %v624
        %s628 = scalar_lea.vmem %s2, 40
        %v629 = vld [vmem:[%s628] sm:$0xf]
        %631 = vset.pattern.permute.xlu0 0
        %632 = vperm.xlu0 %631, %v629
        %v633 = vpop.permute.xlu0 %632
        %v635 = vperm.slane %v595, 2
        %v636 = vperm.slane %v594, 2
        %v637 = vperm.slane %v593, 2
        %v638 = vmul.f32 %v633, %v635
        %v639 = vmul.f32 %v633, %v636
        %v640 = vmul.f32 %v633, %v637
        %v641 = vadd.f32 %v625, %v638
        %v642 = vadd.f32 %v626, %v639
        %v643 = vadd.f32 %v627, %v640
        %s644 = scalar_lea.vmem %s2, 44
        %v645 = vld [vmem:[%s644] sm:$0xf]
        %647 = vset.pattern.permute.xlu0 0
        %648 = vperm.xlu0 %647, %v645
        %v649 = vpop.permute.xlu0 %648
        %v651 = vperm.slane %v595, 3
        %v652 = vperm.slane %v594, 3
        %v653 = vperm.slane %v593, 3
        %v654 = vmul.f32 %v649, %v651
        %v655 = vmul.f32 %v649, %v652
        %v656 = vmul.f32 %v649, %v653
        %v657 = vadd.f32 %v641, %v654
        %v658 = vadd.f32 %v642, %v655
        %v659 = vadd.f32 %v643, %v656
        %660 = vst [vmem:[#allocation1] ss:$2 sm:$0xff] %v408
        %s661 = scalar_lea.vmem [#allocation1], 16
        %662 = vst [vmem:[%s661] ss:$2 sm:$0xff] %v409
        %v663 = vld.sshfl [vmem:[#allocation1] sm:$0xff pattern:$0x75316420]
        %v664 = vld.sshfl [vmem:[#allocation1 + $0x8] sm:$0xff pattern:$0x75316420]
        %v665 = vld.sshfl [vmem:[#allocation1 + $0x10] sm:$0xff pattern:$0x75316420]
        %669 = vrot.lane.b32.xlu0 %v663, 1
        %v670 = vpop.permute.xlu0 %669
        %671 = vrot.lane.b32.xlu0 %v664, 1
        %v672 = vpop.permute.xlu0 %671
        %673 = vrot.lane.b32.xlu0 %v665, 1
        %v674 = vpop.permute.xlu0 %673
        %vm675 = vcmp.lt.s32.totalorder %v225, 1
        %v676 = vsel %vm675, %v672, %v674
        %v677 = vsel %vm675, %v670, %v672
        %v678 = vsel %vm675, %v674, %v670
        %s679 = scalar_lea.vmem %s2, 48
        %v680 = vld [vmem:[%s679] sm:$0xf]
        %682 = vset.pattern.permute.xlu0 0
        %683 = vperm.xlu0 %682, %v680
        %v684 = vpop.permute.xlu0 %683
        %v686 = vperm.slane %v678, 0
        %v687 = vperm.slane %v677, 0
        %v688 = vperm.slane %v676, 0
        %v689 = vmul.f32 %v684, %v686
        %v690 = vmul.f32 %v684, %v687
        %v691 = vmul.f32 %v684, %v688
        %v692 = vadd.f32 %v657, %v689
        %v693 = vadd.f32 %v658, %v690
        %v694 = vadd.f32 %v659, %v691
        %s695 = scalar_lea.vmem %s2, 52
        %v696 = vld [vmem:[%s695] sm:$0xf]
        %698 = vset.pattern.permute.xlu0 0
        %699 = vperm.xlu0 %698, %v696
        %v700 = vpop.permute.xlu0 %699
        %v702 = vperm.slane %v678, 1
        %v703 = vperm.slane %v677, 1
        %v704 = vperm.slane %v676, 1
        %v705 = vmul.f32 %v700, %v702
        %v706 = vmul.f32 %v700, %v703
        %v707 = vmul.f32 %v700, %v704
        %v708 = vadd.f32 %v692, %v705
        %v709 = vadd.f32 %v693, %v706
        %v710 = vadd.f32 %v694, %v707
        %s711 = scalar_lea.vmem %s2, 56
        %v712 = vld [vmem:[%s711] sm:$0xf]
        %714 = vset.pattern.permute.xlu0 0
        %715 = vperm.xlu0 %714, %v712
        %v716 = vpop.permute.xlu0 %715
        %v718 = vperm.slane %v678, 2
        %v719 = vperm.slane %v677, 2
        %v720 = vperm.slane %v676, 2
        %v721 = vmul.f32 %v716, %v718
        %v722 = vmul.f32 %v716, %v719
        %v723 = vmul.f32 %v716, %v720
        %v724 = vadd.f32 %v708, %v721
        %v725 = vadd.f32 %v709, %v722
        %v726 = vadd.f32 %v710, %v723
        %s727 = scalar_lea.vmem %s2, 60
        %v728 = vld [vmem:[%s727] sm:$0xf]
        %730 = vset.pattern.permute.xlu0 0
        %731 = vperm.xlu0 %730, %v728
        %v732 = vpop.permute.xlu0 %731
        %v734 = vperm.slane %v678, 3
        %v735 = vperm.slane %v677, 3
        %v736 = vperm.slane %v676, 3
        %v737 = vmul.f32 %v732, %v734
        %v738 = vmul.f32 %v732, %v735
        %v739 = vmul.f32 %v732, %v736
        %v740 = vadd.f32 %v724, %v737
        %v741 = vadd.f32 %v725, %v738
        %v742 = vadd.f32 %v726, %v739
        %s743 = scalar_lea.vmem %s2, 64
        %v744 = vld [vmem:[%s743] sm:$0xf]
        %746 = vset.pattern.permute.xlu0 0
        %747 = vperm.xlu0 %746, %v744
        %v748 = vpop.permute.xlu0 %747
        %v750 = vperm.slane %v408, 0
        %v751 = vperm.slane %v408, 4
        %v752 = vperm.slane %v409, 0
        %v756 = vperm.slane %v750, 0
        %v757 = vperm.slane %v751, 0
        %v758 = vperm.slane %v752, 0
        %v759 = vmul.f32 %v748, %v756
        %v760 = vmul.f32 %v748, %v757
        %v761 = vmul.f32 %v748, %v758
        %v762 = vadd.f32 %v740, %v759
        %v763 = vadd.f32 %v741, %v760
        %v764 = vadd.f32 %v742, %v761
        %s765 = scalar_lea.vmem %s2, 68
        %v766 = vld [vmem:[%s765] sm:$0xf]
        %768 = vset.pattern.permute.xlu0 0
        %769 = vperm.xlu0 %768, %v766
        %v770 = vpop.permute.xlu0 %769
        %v772 = vperm.slane %v408, 1
        %v773 = vperm.slane %v408, 5
        %v774 = vperm.slane %v409, 1
        %v778 = vperm.slane %v772, 1
        %v779 = vperm.slane %v773, 1
        %v780 = vperm.slane %v774, 1
        %v781 = vmul.f32 %v770, %v778
        %v782 = vmul.f32 %v770, %v779
        %v783 = vmul.f32 %v770, %v780
        %v784 = vadd.f32 %v762, %v781
        %v785 = vadd.f32 %v763, %v782
        %v786 = vadd.f32 %v764, %v783
        %s787 = scalar_lea.vmem %s2, 72
        %v788 = vld [vmem:[%s787] sm:$0xf]
        %790 = vset.pattern.permute.xlu0 0
        %791 = vperm.xlu0 %790, %v788
        %v792 = vpop.permute.xlu0 %791
        %v794 = vperm.slane %v408, 2
        %v795 = vperm.slane %v408, 6
        %v796 = vperm.slane %v409, 2
        %v800 = vperm.slane %v794, 2
        %v801 = vperm.slane %v795, 2
        %v802 = vperm.slane %v796, 2
        %v803 = vmul.f32 %v792, %v800
        %v804 = vmul.f32 %v792, %v801
        %v805 = vmul.f32 %v792, %v802
        %v806 = vadd.f32 %v784, %v803
        %v807 = vadd.f32 %v785, %v804
        %v808 = vadd.f32 %v786, %v805
        %s809 = scalar_lea.vmem %s2, 76
        %v810 = vld [vmem:[%s809] sm:$0xf]
        %812 = vset.pattern.permute.xlu0 0
        %813 = vperm.xlu0 %812, %v810
        %v814 = vpop.permute.xlu0 %813
        %v816 = vperm.slane %v408, 3
        %v817 = vperm.slane %v408, 7
        %v818 = vperm.slane %v409, 3
        %v822 = vperm.slane %v816, 3
        %v823 = vperm.slane %v817, 3
        %v824 = vperm.slane %v818, 3
        %v825 = vmul.f32 %v814, %v822
        %v826 = vmul.f32 %v814, %v823
        %v827 = vmul.f32 %v814, %v824
        %v828 = vadd.f32 %v806, %v825
        %v829 = vadd.f32 %v807, %v826
        %v830 = vadd.f32 %v808, %v827
        %831 = vst [vmem:[#allocation1] ss:$2 sm:$0xff] %v408
        %s832 = scalar_lea.vmem [#allocation1], 16
        %833 = vst [vmem:[%s832] ss:$2 sm:$0xff] %v409
        %v834 = vld.sshfl [vmem:[#allocation1] sm:$0xff pattern:$0x75316420]
        %v835 = vld.sshfl [vmem:[#allocation1 + $0x8] sm:$0xff pattern:$0x75316420]
        %v836 = vld.sshfl [vmem:[#allocation1 + $0x10] sm:$0xff pattern:$0x75316420]
        %840 = vrot.lane.b32.xlu0 %v834, 127
        %v841 = vpop.permute.xlu0 %840
        %842 = vrot.lane.b32.xlu0 %v835, 127
        %v843 = vpop.permute.xlu0 %842
        %844 = vrot.lane.b32.xlu0 %v836, 127
        %v845 = vpop.permute.xlu0 %844
        %vm846 = vcmp.lt.s32.totalorder %v225, 127
        %v847 = vsel %vm846, %v843, %v845
        %v848 = vsel %vm846, %v841, %v843
        %v849 = vsel %vm846, %v845, %v841
        %s850 = scalar_lea.vmem %s2, 80
        %v851 = vld [vmem:[%s850] sm:$0xf]
        %853 = vset.pattern.permute.xlu0 0
        %854 = vperm.xlu0 %853, %v851
        %v855 = vpop.permute.xlu0 %854
        %v857 = vperm.slane %v848, 0
        %v858 = vperm.slane %v847, 0
        %v859 = vperm.slane %v849, 0
        %v860 = vmul.f32 %v855, %v857
        %v861 = vmul.f32 %v855, %v858
        %v862 = vmul.f32 %v855, %v859
        %v863 = vadd.f32 %v828, %v860
        %v864 = vadd.f32 %v829, %v861
        %v865 = vadd.f32 %v830, %v862
        %s866 = scalar_lea.vmem %s2, 84
        %v867 = vld [vmem:[%s866] sm:$0xf]
        %869 = vset.pattern.permute.xlu0 0
        %870 = vperm.xlu0 %869, %v867
        %v871 = vpop.permute.xlu0 %870
        %v873 = vperm.slane %v848, 1
        %v874 = vperm.slane %v847, 1
        %v875 = vperm.slane %v849, 1
        %v876 = vmul.f32 %v871, %v873
        %v877 = vmul.f32 %v871, %v874
        %v878 = vmul.f32 %v871, %v875
        %v879 = vadd.f32 %v863, %v876
        %v880 = vadd.f32 %v864, %v877
        %v881 = vadd.f32 %v865, %v878
        %s882 = scalar_lea.vmem %s2, 88
        %v883 = vld [vmem:[%s882] sm:$0xf]
        %885 = vset.pattern.permute.xlu0 0
        %886 = vperm.xlu0 %885, %v883
        %v887 = vpop.permute.xlu0 %886
        %v889 = vperm.slane %v848, 2
        %v890 = vperm.slane %v847, 2
        %v891 = vperm.slane %v849, 2
        %v892 = vmul.f32 %v887, %v889
        %v893 = vmul.f32 %v887, %v890
        %v894 = vmul.f32 %v887, %v891
        %v895 = vadd.f32 %v879, %v892
        %v896 = vadd.f32 %v880, %v893
        %v897 = vadd.f32 %v881, %v894
        %s898 = scalar_lea.vmem %s2, 92
        %v899 = vld [vmem:[%s898] sm:$0xf]
        %901 = vset.pattern.permute.xlu0 0
        %902 = vperm.xlu0 %901, %v899
        %v903 = vpop.permute.xlu0 %902
        %v905 = vperm.slane %v848, 3
        %v906 = vperm.slane %v847, 3
        %v907 = vperm.slane %v849, 3
        %v908 = vmul.f32 %v903, %v905
        %v909 = vmul.f32 %v903, %v906
        %v910 = vmul.f32 %v903, %v907
        %v911 = vadd.f32 %v895, %v908
        %v912 = vadd.f32 %v896, %v909
        %v913 = vadd.f32 %v897, %v910
        %914 = vst [vmem:[#allocation1] ss:$2 sm:$0xff] %v408
        %s915 = scalar_lea.vmem [#allocation1], 16
        %916 = vst [vmem:[%s915] ss:$2 sm:$0xff] %v409
        %v917 = vld.sshfl [vmem:[#allocation1] sm:$0xff pattern:$0x75316420]
        %v918 = vld.sshfl [vmem:[#allocation1 + $0x8] sm:$0xff pattern:$0x75316420]
        %v919 = vld.sshfl [vmem:[#allocation1 + $0x10] sm:$0xff pattern:$0x75316420]
        %923 = vrot.lane.b32.xlu0 %v917, 111
        %v924 = vpop.permute.xlu0 %923
        %925 = vrot.lane.b32.xlu0 %v918, 111
        %v926 = vpop.permute.xlu0 %925
        %927 = vrot.lane.b32.xlu0 %v919, 111
        %v928 = vpop.permute.xlu0 %927
        %vm929 = vcmp.lt.s32.totalorder %v225, 111
        %v930 = vsel %vm929, %v926, %v928
        %v931 = vsel %vm929, %v924, %v926
        %v932 = vsel %vm929, %v928, %v924
        %s933 = scalar_lea.vmem %s2, 96
        %v934 = vld [vmem:[%s933] sm:$0xf]
        %936 = vset.pattern.permute.xlu0 0
        %937 = vperm.xlu0 %936, %v934
        %v938 = vpop.permute.xlu0 %937
        %v940 = vperm.slane %v931, 0
        %v941 = vperm.slane %v930, 0
        %v942 = vperm.slane %v932, 0
        %v943 = vmul.f32 %v938, %v940
        %v944 = vmul.f32 %v938, %v941
        %v945 = vmul.f32 %v938, %v942
        %v946 = vadd.f32 %v911, %v943
        %v947 = vadd.f32 %v912, %v944
        %v948 = vadd.f32 %v913, %v945
        %s949 = scalar_lea.vmem %s2, 100
        %v950 = vld [vmem:[%s949] sm:$0xf]
        %952 = vset.pattern.permute.xlu0 0
        %953 = vperm.xlu0 %952, %v950
        %v954 = vpop.permute.xlu0 %953
        %v956 = vperm.slane %v931, 1
        %v957 = vperm.slane %v930, 1
        %v958 = vperm.slane %v932, 1
        %v959 = vmul.f32 %v954, %v956
        %v960 = vmul.f32 %v954, %v957
        %v961 = vmul.f32 %v954, %v958
        %v962 = vadd.f32 %v946, %v959
        %v963 = vadd.f32 %v947, %v960
        %v964 = vadd.f32 %v948, %v961
        %s965 = scalar_lea.vmem %s2, 104
        %v966 = vld [vmem:[%s965] sm:$0xf]
        %968 = vset.pattern.permute.xlu0 0
        %969 = vperm.xlu0 %968, %v966
        %v970 = vpop.permute.xlu0 %969
        %v972 = vperm.slane %v931, 2
        %v973 = vperm.slane %v930, 2
        %v974 = vperm.slane %v932, 2
        %v975 = vmul.f32 %v970, %v972
        %v976 = vmul.f32 %v970, %v973
        %v977 = vmul.f32 %v970, %v974
        %v978 = vadd.f32 %v962, %v975
        %v979 = vadd.f32 %v963, %v976
        %v980 = vadd.f32 %v964, %v977
        %s981 = scalar_lea.vmem %s2, 108
        %v982 = vld [vmem:[%s981] sm:$0xf]
        %984 = vset.pattern.permute.xlu0 0
        %985 = vperm.xlu0 %984, %v982
        %v986 = vpop.permute.xlu0 %985
        %v988 = vperm.slane %v931, 3
        %v989 = vperm.slane %v930, 3
        %v990 = vperm.slane %v932, 3
        %v991 = vmul.f32 %v986, %v988
        %v992 = vmul.f32 %v986, %v989
        %v993 = vmul.f32 %v986, %v990
        %v994 = vadd.f32 %v978, %v991
        %v995 = vadd.f32 %v979, %v992
        %v996 = vadd.f32 %v980, %v993
        %997 = vst [vmem:[#allocation1] ss:$2 sm:$0xff] %v408
        %s998 = scalar_lea.vmem [#allocation1], 16
        %999 = vst [vmem:[%s998] ss:$2 sm:$0xff] %v409
        %v1000 = vld.sshfl [vmem:[#allocation1] sm:$0xff pattern:$0x75316420]
        %v1001 = vld.sshfl [vmem:[#allocation1 + $0x8] sm:$0xff pattern:$0x75316420]
        %v1002 = vld.sshfl [vmem:[#allocation1 + $0x10] sm:$0xff pattern:$0x75316420]
        %1006 = vrot.lane.b32.xlu0 %v1000, 110
        %v1007 = vpop.permute.xlu0 %1006
        %1008 = vrot.lane.b32.xlu0 %v1001, 110
        %v1009 = vpop.permute.xlu0 %1008
        %1010 = vrot.lane.b32.xlu0 %v1002, 110
        %v1011 = vpop.permute.xlu0 %1010
        %vm1012 = vcmp.lt.s32.totalorder %v225, 110
        %v1013 = vsel %vm1012, %v1009, %v1011
        %v1014 = vsel %vm1012, %v1007, %v1009
        %v1015 = vsel %vm1012, %v1011, %v1007
        %s1016 = scalar_lea.vmem %s2, 112
        %v1017 = vld [vmem:[%s1016] sm:$0xf]
        %1019 = vset.pattern.permute.xlu0 0
        %1020 = vperm.xlu0 %1019, %v1017
        %v1021 = vpop.permute.xlu0 %1020
        %v1023 = vperm.slane %v1014, 0
        %v1024 = vperm.slane %v1013, 0
        %v1025 = vperm.slane %v1015, 0
        %v1026 = vmul.f32 %v1021, %v1023
        %v1027 = vmul.f32 %v1021, %v1024
        %v1028 = vmul.f32 %v1021, %v1025
        %v1029 = vadd.f32 %v994, %v1026
        %v1030 = vadd.f32 %v995, %v1027
        %v1031 = vadd.f32 %v996, %v1028
        %s1032 = scalar_lea.vmem %s2, 116
        %v1033 = vld [vmem:[%s1032] sm:$0xf]
        %1035 = vset.pattern.permute.xlu0 0
        %1036 = vperm.xlu0 %1035, %v1033
        %v1037 = vpop.permute.xlu0 %1036
        %v1039 = vperm.slane %v1014, 1
        %v1040 = vperm.slane %v1013, 1
        %v1041 = vperm.slane %v1015, 1
        %v1042 = vmul.f32 %v1037, %v1039
        %v1043 = vmul.f32 %v1037, %v1040
        %v1044 = vmul.f32 %v1037, %v1041
        %v1045 = vadd.f32 %v1029, %v1042
        %v1046 = vadd.f32 %v1030, %v1043
        %v1047 = vadd.f32 %v1031, %v1044
        %s1048 = scalar_lea.vmem %s2, 120
        %v1049 = vld [vmem:[%s1048] sm:$0xf]
        %1051 = vset.pattern.permute.xlu0 0
        %1052 = vperm.xlu0 %1051, %v1049
        %v1053 = vpop.permute.xlu0 %1052
        %v1055 = vperm.slane %v1014, 2
        %v1056 = vperm.slane %v1013, 2
        %v1057 = vperm.slane %v1015, 2
        %v1058 = vmul.f32 %v1053, %v1055
        %v1059 = vmul.f32 %v1053, %v1056
        %v1060 = vmul.f32 %v1053, %v1057
        %v1061 = vadd.f32 %v1045, %v1058
        %v1062 = vadd.f32 %v1046, %v1059
        %v1063 = vadd.f32 %v1047, %v1060
        %s1064 = scalar_lea.vmem %s2, 124
        %v1065 = vld [vmem:[%s1064] sm:$0xf]
        %1067 = vset.pattern.permute.xlu0 0
        %1068 = vperm.xlu0 %1067, %v1065
        %v1069 = vpop.permute.xlu0 %1068
        %v1071 = vperm.slane %v1014, 3
        %v1072 = vperm.slane %v1013, 3
        %v1073 = vperm.slane %v1015, 3
        %v1074 = vmul.f32 %v1069, %v1071
        %v1075 = vmul.f32 %v1069, %v1072
        %v1076 = vmul.f32 %v1069, %v1073
        %v1077 = vadd.f32 %v1061, %v1074
        %v1078 = vadd.f32 %v1062, %v1075
        %v1079 = vadd.f32 %v1063, %v1076
        %1080 = vst [vmem:[#allocation1] ss:$2 sm:$0xff] %v408
        %s1081 = scalar_lea.vmem [#allocation1], 16
        %1082 = vst [vmem:[%s1081] ss:$2 sm:$0xff] %v409
        %v1083 = vld.sshfl [vmem:[#allocation1] sm:$0xff pattern:$0x75316420]
        %v1084 = vld.sshfl [vmem:[#allocation1 + $0x8] sm:$0xff pattern:$0x75316420]
        %v1085 = vld.sshfl [vmem:[#allocation1 + $0x10] sm:$0xff pattern:$0x75316420]
        %1089 = vrot.lane.b32.xlu0 %v1083, 109
        %v1090 = vpop.permute.xlu0 %1089
        %1091 = vrot.lane.b32.xlu0 %v1084, 109
        %v1092 = vpop.permute.xlu0 %1091
        %1093 = vrot.lane.b32.xlu0 %v1085, 109
        %v1094 = vpop.permute.xlu0 %1093
        %vm1095 = vcmp.lt.s32.totalorder %v225, 109
        %v1096 = vsel %vm1095, %v1092, %v1094
        %v1097 = vsel %vm1095, %v1090, %v1092
        %v1098 = vsel %vm1095, %v1094, %v1090
        %s1099 = scalar_lea.vmem %s2, 128
        %v1100 = vld [vmem:[%s1099] sm:$0xf]
        %1102 = vset.pattern.permute.xlu0 0
        %1103 = vperm.xlu0 %1102, %v1100
        %v1104 = vpop.permute.xlu0 %1103
        %v1106 = vperm.slane %v1097, 0
        %v1107 = vperm.slane %v1096, 0
        %v1108 = vperm.slane %v1098, 0
        %v1109 = vmul.f32 %v1104, %v1106
        %v1110 = vmul.f32 %v1104, %v1107
        %v1111 = vmul.f32 %v1104, %v1108
        %v1112 = vadd.f32 %v1077, %v1109
        %v1113 = vadd.f32 %v1078, %v1110
        %v1114 = vadd.f32 %v1079, %v1111
        %s1115 = scalar_lea.vmem %s2, 132
        %v1116 = vld [vmem:[%s1115] sm:$0xf]
        %1118 = vset.pattern.permute.xlu0 0
        %1119 = vperm.xlu0 %1118, %v1116
        %v1120 = vpop.permute.xlu0 %1119
        %v1122 = vperm.slane %v1097, 1
        %v1123 = vperm.slane %v1096, 1
        %v1124 = vperm.slane %v1098, 1
        %v1125 = vmul.f32 %v1120, %v1122
        %v1126 = vmul.f32 %v1120, %v1123
        %v1127 = vmul.f32 %v1120, %v1124
        %v1128 = vadd.f32 %v1112, %v1125
        %v1129 = vadd.f32 %v1113, %v1126
        %v1130 = vadd.f32 %v1114, %v1127
        %s1131 = scalar_lea.vmem %s2, 136
        %v1132 = vld [vmem:[%s1131] sm:$0xf]
        %1134 = vset.pattern.permute.xlu0 0
        %1135 = vperm.xlu0 %1134, %v1132
        %v1136 = vpop.permute.xlu0 %1135
        %v1138 = vperm.slane %v1097, 2
        %v1139 = vperm.slane %v1096, 2
        %v1140 = vperm.slane %v1098, 2
        %v1141 = vmul.f32 %v1136, %v1138
        %v1142 = vmul.f32 %v1136, %v1139
        %v1143 = vmul.f32 %v1136, %v1140
        %v1144 = vadd.f32 %v1128, %v1141
        %v1145 = vadd.f32 %v1129, %v1142
        %v1146 = vadd.f32 %v1130, %v1143
        %s1147 = scalar_lea.vmem %s2, 140
        %v1148 = vld [vmem:[%s1147] sm:$0xf]
        %1150 = vset.pattern.permute.xlu0 0
        %1151 = vperm.xlu0 %1150, %v1148
        %v1152 = vpop.permute.xlu0 %1151
        %v1154 = vperm.slane %v1097, 3
        %v1155 = vperm.slane %v1096, 3
        %v1156 = vperm.slane %v1098, 3
        %v1157 = vmul.f32 %v1152, %v1154
        %v1158 = vmul.f32 %v1152, %v1155
        %v1159 = vmul.f32 %v1152, %v1156
        %v1160 = vadd.f32 %v1144, %v1157
        %v1161 = vadd.f32 %v1145, %v1158
        %v1162 = vadd.f32 %v1146, %v1159
        %v1164 = vperm.slane %v198, 0
        %v1165 = vperm.slane %v198, 1
        %v1166 = vperm.slane %v198, 2
        %v1170 = vmul.f32 %v1160, %v1164
        %v1171 = vmul.f32 %v1161, %v1165
        %v1172 = vmul.f32 %v1162, %v1166
        %v1173 = vsel %vm255, %v1170, 0.0
        %v1174 = vsel %vm255, %v1171, 0.0
        %v1175 = vadd.f32 %v1173, %v1174
        %v1176 = vsel %vm255, %v1172, 0.0
        %v1177 = vadd.f32 %v1175, %v1176
        %1178 = vadd.xlane.f32.xlu0 %v1177
        %v1179 = vpop.xlane.xlu0 %1178
        %v1180 = vmul.f32 %v1179, 0.00390625
        %v1181 = vsub.f32 %v1160, %v1180
        %v1182 = vsub.f32 %v1161, %v1180
        %v1183 = vsub.f32 %v1162, %v1180
        %v1184 = vmul.f32 %v1181, %v1181
        %v1185 = vmul.f32 %v1182, %v1182
        %v1186 = vmul.f32 %v1183, %v1183
        %v1187 = vmul.f32 %v1184, %v1164
        %v1188 = vmul.f32 %v1185, %v1165
        %v1189 = vmul.f32 %v1186, %v1166
        %v1190 = vsel %vm255, %v1187, 0.0
        %v1191 = vsel %vm255, %v1188, 0.0
        %v1192 = vadd.f32 %v1190, %v1191
        %v1193 = vsel %vm255, %v1189, 0.0
        %v1194 = vadd.f32 %v1192, %v1193
        %1195 = vadd.xlane.f32.xlu0 %v1194
        %v1196 = vpop.xlane.xlu0 %1195
        %v1197 = vmul.f32 %v1196, 0.00390625
        %v1198 = vadd.f32 %v1197, 1e-05
        %v1199 = vrsqrt.pop %v1198
        %v1200 = vmul.f32 %v1199, %v1198
        %v1201 = vmul.f32 %v1200, %v1199
        %v1202 = vmul.f32 0.5, %v1201
        %v1203 = vsub.f32 1.5, %v1202
        %v1204 = vmul.f32 %v1199, %v1203
        %vm1205 = vweird.f32 %v1198
        %vm1206 = vweird.f32 %v1199
        %vm1207 = vmor %vm1205, %vm1206
        %v1208 = vsel %vm1207, %v1199, %v1204
        %v1209 = vmul.f32 %v1181, %v1208
        %v1210 = vmul.f32 %v1182, %v1208
        %v1211 = vmul.f32 %v1183, %v1208
        %v1212 = vmax.f32 %v1209, 0.0
        %v1213 = vmax.f32 %v1210, 0.0
        %v1214 = vmax.f32 %v1211, 0.0
        %1215 = vrot.lane.b32.xlu0 %v1212, 126
        %v1216 = vpop.permute.xlu0 %1215
        %1217 = vrot.lane.b32.xlu0 %v1213, 126
        %v1218 = vpop.permute.xlu0 %1217
        %1219 = vrot.lane.b32.xlu0 %v1214, 126
        %v1220 = vpop.permute.xlu0 %1219
        %v1221 = vsel %vm226, %v1218, %v1220
        %v1222 = vsel %vm226, %v1216, %v1218
        %v1223 = vsel %vm226, %v1220, %v1216
        %v1224 = vsub.f32 %v1222, %v1212
        %v1225 = vsub.f32 %v1221, %v1213
        %v1226 = vsub.f32 %v1223, %v1214
        %v1227 = vmul.f32 %v243, %v1224
        %v1228 = vmul.f32 %v244, %v1225
        %v1229 = vmul.f32 %v245, %v1226
        %v1230 = vadd.f32 %v1212, %v1227
        %v1231 = vadd.f32 %v1213, %v1228
        %v1232 = vadd.f32 %v1214, %v1229
        %1233 = vrot.lane.b32.xlu0 %v1230, 2
        %v1234 = vpop.permute.xlu0 %1233
        %1235 = vrot.lane.b32.xlu0 %v1231, 2
        %v1236 = vpop.permute.xlu0 %1235
        %1237 = vrot.lane.b32.xlu0 %v1232, 2
        %v1238 = vpop.permute.xlu0 %1237
        %v1239 = vsel %vm277, %v1236, %v1238
        %v1240 = vsel %vm277, %v1234, %v1236
        %v1241 = vsel %vm277, %v1238, %v1234
        %v1242 = vsub.f32 %v1241, %v1230
        %v1243 = vsub.f32 %v1240, %v1231
        %v1244 = vsub.f32 %v1239, %v1232
        %v1245 = vmul.f32 %v294, %v1242
        %v1246 = vmul.f32 %v295, %v1243
        %v1247 = vmul.f32 %v296, %v1244
        %v1248 = vadd.f32 %v1230, %v1245
        %v1249 = vadd.f32 %v1231, %v1246
        %v1250 = vadd.f32 %v1232, %v1247
        %1251 = vrot.lane.b32.xlu0 %v1248, 92
        %v1252 = vpop.permute.xlu0 %1251
        %1253 = vrot.lane.b32.xlu0 %v1249, 92
        %v1254 = vpop.permute.xlu0 %1253
        %1255 = vrot.lane.b32.xlu0 %v1250, 92
        %v1256 = vpop.permute.xlu0 %1255
        %v1257 = vsel %vm327, %v1254, %v1256
        %v1258 = vsel %vm327, %v1252, %v1254
        %v1259 = vsel %vm327, %v1256, %v1252
        %v1260 = vsub.f32 %v1258, %v1248
        %v1261 = vsub.f32 %v1257, %v1249
        %v1262 = vsub.f32 %v1259, %v1250
        %v1263 = vmul.f32 %v344, %v1260
        %v1264 = vmul.f32 %v345, %v1261
        %v1265 = vmul.f32 %v346, %v1262
        %v1266 = vadd.f32 %v1248, %v1263
        %v1267 = vadd.f32 %v1249, %v1264
        %v1268 = vadd.f32 %v1250, %v1265
        %1269 = vrot.lane.b32.xlu0 %v1266, 36
        %v1270 = vpop.permute.xlu0 %1269
        %1271 = vrot.lane.b32.xlu0 %v1267, 36
        %v1272 = vpop.permute.xlu0 %1271
        %1273 = vrot.lane.b32.xlu0 %v1268, 36
        %v1274 = vpop.permute.xlu0 %1273
        %v1275 = vsel %vm377, %v1272, %v1274
        %v1276 = vsel %vm377, %v1270, %v1272
        %v1277 = vsel %vm377, %v1274, %v1270
        %v1278 = vsub.f32 %v1277, %v1266
        %v1279 = vsub.f32 %v1276, %v1267
        %v1280 = vsub.f32 %v1275, %v1268
        %v1281 = vmul.f32 %v394, %v1278
        %v1282 = vmul.f32 %v395, %v1279
        %v1283 = vmul.f32 %v396, %v1280
        %v1284 = vadd.f32 %v1266, %v1281
        %v1285 = vadd.f32 %v1267, %v1282
        %v1286 = vadd.f32 %v1268, %v1283
        %1287 = vrot.lane.b32.xlu0 %v1284, 19
        %v1288 = vpop.permute.xlu0 %1287
        %1289 = vrot.lane.b32.xlu0 %v1285, 19
        %v1290 = vpop.permute.xlu0 %1289
        %1291 = vrot.lane.b32.xlu0 %v1286, 19
        %v1292 = vpop.permute.xlu0 %1291
        %v1293 = vsel %vm427, %v1290, %v1292
        %v1294 = vsel %vm427, %v1288, %v1290
        %v1295 = vsel %vm427, %v1292, %v1288
        %v1296 = vld [vmem:[%s3] sm:$0xf]
        %1298 = vset.pattern.permute.xlu0 0
        %1299 = vperm.xlu0 %1298, %v1296
        %v1300 = vpop.permute.xlu0 %1299
        %v1302 = vperm.slane %v1295, 0
        %v1303 = vperm.slane %v1294, 0
        %v1304 = vperm.slane %v1293, 0
        %v1305 = vmul.f32 %v1300, %v1302
        %v1306 = vmul.f32 %v1300, %v1303
        %v1307 = vmul.f32 %v1300, %v1304
        %v1308 = vadd.f32 %v1305, 0.0
        %v1309 = vadd.f32 %v1306, 0.0
        %v1310 = vadd.f32 %v1307, 0.0
        %s1311 = scalar_lea.vmem %s3, 4
        %v1312 = vld [vmem:[%s1311] sm:$0xf]
        %1314 = vset.pattern.permute.xlu0 0
        %1315 = vperm.xlu0 %1314, %v1312
        %v1316 = vpop.permute.xlu0 %1315
        %v1318 = vperm.slane %v1295, 1
        %v1319 = vperm.slane %v1294, 1
        %v1320 = vperm.slane %v1293, 1
        %v1321 = vmul.f32 %v1316, %v1318
        %v1322 = vmul.f32 %v1316, %v1319
        %v1323 = vmul.f32 %v1316, %v1320
        %v1324 = vadd.f32 %v1308, %v1321
        %v1325 = vadd.f32 %v1309, %v1322
        %v1326 = vadd.f32 %v1310, %v1323
        %s1327 = scalar_lea.vmem %s3, 8
        %v1328 = vld [vmem:[%s1327] sm:$0xf]
        %1330 = vset.pattern.permute.xlu0 0
        %1331 = vperm.xlu0 %1330, %v1328
        %v1332 = vpop.permute.xlu0 %1331
        %v1334 = vperm.slane %v1295, 2
        %v1335 = vperm.slane %v1294, 2
        %v1336 = vperm.slane %v1293, 2
        %v1337 = vmul.f32 %v1332, %v1334
        %v1338 = vmul.f32 %v1332, %v1335
        %v1339 = vmul.f32 %v1332, %v1336
        %v1340 = vadd.f32 %v1324, %v1337
        %v1341 = vadd.f32 %v1325, %v1338
        %v1342 = vadd.f32 %v1326, %v1339
        %s1343 = scalar_lea.vmem %s3, 12
        %v1344 = vld [vmem:[%s1343] sm:$0xf]
        %1346 = vset.pattern.permute.xlu0 0
        %1347 = vperm.xlu0 %1346, %v1344
        %v1348 = vpop.permute.xlu0 %1347
        %v1350 = vperm.slane %v1295, 3
        %v1351 = vperm.slane %v1294, 3
        %v1352 = vperm.slane %v1293, 3
        %v1353 = vmul.f32 %v1348, %v1350
        %v1354 = vmul.f32 %v1348, %v1351
        %v1355 = vmul.f32 %v1348, %v1352
        %v1356 = vadd.f32 %v1340, %v1353
        %v1357 = vadd.f32 %v1341, %v1354
        %v1358 = vadd.f32 %v1342, %v1355
        %1359 = vrot.lane.b32.xlu0 %v1284, 18
        %v1360 = vpop.permute.xlu0 %1359
        %1361 = vrot.lane.b32.xlu0 %v1285, 18
        %v1362 = vpop.permute.xlu0 %1361
        %1363 = vrot.lane.b32.xlu0 %v1286, 18
        %v1364 = vpop.permute.xlu0 %1363
        %v1365 = vsel %vm509, %v1362, %v1364
        %v1366 = vsel %vm509, %v1360, %v1362
        %v1367 = vsel %vm509, %v1364, %v1360
        %s1368 = scalar_lea.vmem %s3, 16
        %v1369 = vld [vmem:[%s1368] sm:$0xf]
        %1371 = vset.pattern.permute.xlu0 0
        %1372 = vperm.xlu0 %1371, %v1369
        %v1373 = vpop.permute.xlu0 %1372
        %v1375 = vperm.slane %v1367, 0
        %v1376 = vperm.slane %v1366, 0
        %v1377 = vperm.slane %v1365, 0
        %v1378 = vmul.f32 %v1373, %v1375
        %v1379 = vmul.f32 %v1373, %v1376
        %v1380 = vmul.f32 %v1373, %v1377
        %v1381 = vadd.f32 %v1356, %v1378
        %v1382 = vadd.f32 %v1357, %v1379
        %v1383 = vadd.f32 %v1358, %v1380
        %s1384 = scalar_lea.vmem %s3, 20
        %v1385 = vld [vmem:[%s1384] sm:$0xf]
        %1387 = vset.pattern.permute.xlu0 0
        %1388 = vperm.xlu0 %1387, %v1385
        %v1389 = vpop.permute.xlu0 %1388
        %v1391 = vperm.slane %v1367, 1
        %v1392 = vperm.slane %v1366, 1
        %v1393 = vperm.slane %v1365, 1
        %v1394 = vmul.f32 %v1389, %v1391
        %v1395 = vmul.f32 %v1389, %v1392
        %v1396 = vmul.f32 %v1389, %v1393
        %v1397 = vadd.f32 %v1381, %v1394
        %v1398 = vadd.f32 %v1382, %v1395
        %v1399 = vadd.f32 %v1383, %v1396
        %s1400 = scalar_lea.vmem %s3, 24
        %v1401 = vld [vmem:[%s1400] sm:$0xf]
        %1403 = vset.pattern.permute.xlu0 0
        %1404 = vperm.xlu0 %1403, %v1401
        %v1405 = vpop.permute.xlu0 %1404
        %v1407 = vperm.slane %v1367, 2
        %v1408 = vperm.slane %v1366, 2
        %v1409 = vperm.slane %v1365, 2
        %v1410 = vmul.f32 %v1405, %v1407
        %v1411 = vmul.f32 %v1405, %v1408
        %v1412 = vmul.f32 %v1405, %v1409
        %v1413 = vadd.f32 %v1397, %v1410
        %v1414 = vadd.f32 %v1398, %v1411
        %v1415 = vadd.f32 %v1399, %v1412
        %s1416 = scalar_lea.vmem %s3, 28
        %v1417 = vld [vmem:[%s1416] sm:$0xf]
        %1419 = vset.pattern.permute.xlu0 0
        %1420 = vperm.xlu0 %1419, %v1417
        %v1421 = vpop.permute.xlu0 %1420
        %v1423 = vperm.slane %v1367, 3
        %v1424 = vperm.slane %v1366, 3
        %v1425 = vperm.slane %v1365, 3
        %v1426 = vmul.f32 %v1421, %v1423
        %v1427 = vmul.f32 %v1421, %v1424
        %v1428 = vmul.f32 %v1421, %v1425
        %v1429 = vadd.f32 %v1413, %v1426
        %v1430 = vadd.f32 %v1414, %v1427
        %v1431 = vadd.f32 %v1415, %v1428
        %1432 = vrot.lane.b32.xlu0 %v1284, 17
        %v1433 = vpop.permute.xlu0 %1432
        %1434 = vrot.lane.b32.xlu0 %v1285, 17
        %v1435 = vpop.permute.xlu0 %1434
        %1436 = vrot.lane.b32.xlu0 %v1286, 17
        %v1437 = vpop.permute.xlu0 %1436
        %v1438 = vsel %vm592, %v1435, %v1437
        %v1439 = vsel %vm592, %v1433, %v1435
        %v1440 = vsel %vm592, %v1437, %v1433
        %s1441 = scalar_lea.vmem %s3, 32
        %v1442 = vld [vmem:[%s1441] sm:$0xf]
        %1444 = vset.pattern.permute.xlu0 0
        %1445 = vperm.xlu0 %1444, %v1442
        %v1446 = vpop.permute.xlu0 %1445
        %v1448 = vperm.slane %v1440, 0
        %v1449 = vperm.slane %v1439, 0
        %v1450 = vperm.slane %v1438, 0
        %v1451 = vmul.f32 %v1446, %v1448
        %v1452 = vmul.f32 %v1446, %v1449
        %v1453 = vmul.f32 %v1446, %v1450
        %v1454 = vadd.f32 %v1429, %v1451
        %v1455 = vadd.f32 %v1430, %v1452
        %v1456 = vadd.f32 %v1431, %v1453
        %s1457 = scalar_lea.vmem %s3, 36
        %v1458 = vld [vmem:[%s1457] sm:$0xf]
        %1460 = vset.pattern.permute.xlu0 0
        %1461 = vperm.xlu0 %1460, %v1458
        %v1462 = vpop.permute.xlu0 %1461
        %v1464 = vperm.slane %v1440, 1
        %v1465 = vperm.slane %v1439, 1
        %v1466 = vperm.slane %v1438, 1
        %v1467 = vmul.f32 %v1462, %v1464
        %v1468 = vmul.f32 %v1462, %v1465
        %v1469 = vmul.f32 %v1462, %v1466
        %v1470 = vadd.f32 %v1454, %v1467
        %v1471 = vadd.f32 %v1455, %v1468
        %v1472 = vadd.f32 %v1456, %v1469
        %s1473 = scalar_lea.vmem %s3, 40
        %v1474 = vld [vmem:[%s1473] sm:$0xf]
        %1476 = vset.pattern.permute.xlu0 0
        %1477 = vperm.xlu0 %1476, %v1474
        %v1478 = vpop.permute.xlu0 %1477
        %v1480 = vperm.slane %v1440, 2
        %v1481 = vperm.slane %v1439, 2
        %v1482 = vperm.slane %v1438, 2
        %v1483 = vmul.f32 %v1478, %v1480
        %v1484 = vmul.f32 %v1478, %v1481
        %v1485 = vmul.f32 %v1478, %v1482
        %v1486 = vadd.f32 %v1470, %v1483
        %v1487 = vadd.f32 %v1471, %v1484
        %v1488 = vadd.f32 %v1472, %v1485
        %s1489 = scalar_lea.vmem %s3, 44
        %v1490 = vld [vmem:[%s1489] sm:$0xf]
        %1492 = vset.pattern.permute.xlu0 0
        %1493 = vperm.xlu0 %1492, %v1490
        %v1494 = vpop.permute.xlu0 %1493
        %v1496 = vperm.slane %v1440, 3
        %v1497 = vperm.slane %v1439, 3
        %v1498 = vperm.slane %v1438, 3
        %v1499 = vmul.f32 %v1494, %v1496
        %v1500 = vmul.f32 %v1494, %v1497
        %v1501 = vmul.f32 %v1494, %v1498
        %v1502 = vadd.f32 %v1486, %v1499
        %v1503 = vadd.f32 %v1487, %v1500
        %v1504 = vadd.f32 %v1488, %v1501
        %1505 = vrot.lane.b32.xlu0 %v1284, 1
        %v1506 = vpop.permute.xlu0 %1505
        %1507 = vrot.lane.b32.xlu0 %v1285, 1
        %v1508 = vpop.permute.xlu0 %1507
        %1509 = vrot.lane.b32.xlu0 %v1286, 1
        %v1510 = vpop.permute.xlu0 %1509
        %v1511 = vsel %vm675, %v1508, %v1510
        %v1512 = vsel %vm675, %v1506, %v1508
        %v1513 = vsel %vm675, %v1510, %v1506
        %s1514 = scalar_lea.vmem %s3, 48
        %v1515 = vld [vmem:[%s1514] sm:$0xf]
        %1517 = vset.pattern.permute.xlu0 0
        %1518 = vperm.xlu0 %1517, %v1515
        %v1519 = vpop.permute.xlu0 %1518
        %v1521 = vperm.slane %v1513, 0
        %v1522 = vperm.slane %v1512, 0
        %v1523 = vperm.slane %v1511, 0
        %v1524 = vmul.f32 %v1519, %v1521
        %v1525 = vmul.f32 %v1519, %v1522
        %v1526 = vmul.f32 %v1519, %v1523
        %v1527 = vadd.f32 %v1502, %v1524
        %v1528 = vadd.f32 %v1503, %v1525
        %v1529 = vadd.f32 %v1504, %v1526
        %s1530 = scalar_lea.vmem %s3, 52
        %v1531 = vld [vmem:[%s1530] sm:$0xf]
        %1533 = vset.pattern.permute.xlu0 0
        %1534 = vperm.xlu0 %1533, %v1531
        %v1535 = vpop.permute.xlu0 %1534
        %v1537 = vperm.slane %v1513, 1
        %v1538 = vperm.slane %v1512, 1
        %v1539 = vperm.slane %v1511, 1
        %v1540 = vmul.f32 %v1535, %v1537
        %v1541 = vmul.f32 %v1535, %v1538
        %v1542 = vmul.f32 %v1535, %v1539
        %v1543 = vadd.f32 %v1527, %v1540
        %v1544 = vadd.f32 %v1528, %v1541
        %v1545 = vadd.f32 %v1529, %v1542
        %s1546 = scalar_lea.vmem %s3, 56
        %v1547 = vld [vmem:[%s1546] sm:$0xf]
        %1549 = vset.pattern.permute.xlu0 0
        %1550 = vperm.xlu0 %1549, %v1547
        %v1551 = vpop.permute.xlu0 %1550
        %v1553 = vperm.slane %v1513, 2
        %v1554 = vperm.slane %v1512, 2
        %v1555 = vperm.slane %v1511, 2
        %v1556 = vmul.f32 %v1551, %v1553
        %v1557 = vmul.f32 %v1551, %v1554
        %v1558 = vmul.f32 %v1551, %v1555
        %v1559 = vadd.f32 %v1543, %v1556
        %v1560 = vadd.f32 %v1544, %v1557
        %v1561 = vadd.f32 %v1545, %v1558
        %s1562 = scalar_lea.vmem %s3, 60
        %v1563 = vld [vmem:[%s1562] sm:$0xf]
        %1565 = vset.pattern.permute.xlu0 0
        %1566 = vperm.xlu0 %1565, %v1563
        %v1567 = vpop.permute.xlu0 %1566
        %v1569 = vperm.slane %v1513, 3
        %v1570 = vperm.slane %v1512, 3
        %v1571 = vperm.slane %v1511, 3
        %v1572 = vmul.f32 %v1567, %v1569
        %v1573 = vmul.f32 %v1567, %v1570
        %v1574 = vmul.f32 %v1567, %v1571
        %v1575 = vadd.f32 %v1559, %v1572
        %v1576 = vadd.f32 %v1560, %v1573
        %v1577 = vadd.f32 %v1561, %v1574
        %s1578 = scalar_lea.vmem %s3, 64
        %v1579 = vld [vmem:[%s1578] sm:$0xf]
        %1581 = vset.pattern.permute.xlu0 0
        %1582 = vperm.xlu0 %1581, %v1579
        %v1583 = vpop.permute.xlu0 %1582
        %v1585 = vperm.slane %v1284, 0
        %v1586 = vperm.slane %v1285, 0
        %v1587 = vperm.slane %v1286, 0
        %v1588 = vmul.f32 %v1583, %v1585
        %v1589 = vmul.f32 %v1583, %v1586
        %v1590 = vmul.f32 %v1583, %v1587
        %v1591 = vadd.f32 %v1575, %v1588
        %v1592 = vadd.f32 %v1576, %v1589
        %v1593 = vadd.f32 %v1577, %v1590
        %s1594 = scalar_lea.vmem %s3, 68
        %v1595 = vld [vmem:[%s1594] sm:$0xf]
        %1597 = vset.pattern.permute.xlu0 0
        %1598 = vperm.xlu0 %1597, %v1595
        %v1599 = vpop.permute.xlu0 %1598
        %v1601 = vperm.slane %v1284, 1
        %v1602 = vperm.slane %v1285, 1
        %v1603 = vperm.slane %v1286, 1
        %v1604 = vmul.f32 %v1599, %v1601
        %v1605 = vmul.f32 %v1599, %v1602
        %v1606 = vmul.f32 %v1599, %v1603
        %v1607 = vadd.f32 %v1591, %v1604
        %v1608 = vadd.f32 %v1592, %v1605
        %v1609 = vadd.f32 %v1593, %v1606
        %s1610 = scalar_lea.vmem %s3, 72
        %v1611 = vld [vmem:[%s1610] sm:$0xf]
        %1613 = vset.pattern.permute.xlu0 0
        %1614 = vperm.xlu0 %1613, %v1611
        %v1615 = vpop.permute.xlu0 %1614
        %v1617 = vperm.slane %v1284, 2
        %v1618 = vperm.slane %v1285, 2
        %v1619 = vperm.slane %v1286, 2
        %v1620 = vmul.f32 %v1615, %v1617
        %v1621 = vmul.f32 %v1615, %v1618
        %v1622 = vmul.f32 %v1615, %v1619
        %v1623 = vadd.f32 %v1607, %v1620
        %v1624 = vadd.f32 %v1608, %v1621
        %v1625 = vadd.f32 %v1609, %v1622
        %s1626 = scalar_lea.vmem %s3, 76
        %v1627 = vld [vmem:[%s1626] sm:$0xf]
        %1629 = vset.pattern.permute.xlu0 0
        %1630 = vperm.xlu0 %1629, %v1627
        %v1631 = vpop.permute.xlu0 %1630
        %v1633 = vperm.slane %v1284, 3
        %v1634 = vperm.slane %v1285, 3
        %v1635 = vperm.slane %v1286, 3
        %v1636 = vmul.f32 %v1631, %v1633
        %v1637 = vmul.f32 %v1631, %v1634
        %v1638 = vmul.f32 %v1631, %v1635
        %v1639 = vadd.f32 %v1623, %v1636
        %v1640 = vadd.f32 %v1624, %v1637
        %v1641 = vadd.f32 %v1625, %v1638
        %1642 = vrot.lane.b32.xlu0 %v1284, 127
        %v1643 = vpop.permute.xlu0 %1642
        %1644 = vrot.lane.b32.xlu0 %v1285, 127
        %v1645 = vpop.permute.xlu0 %1644
        %1646 = vrot.lane.b32.xlu0 %v1286, 127
        %v1647 = vpop.permute.xlu0 %1646
        %v1648 = vsel %vm846, %v1645, %v1647
        %v1649 = vsel %vm846, %v1643, %v1645
        %v1650 = vsel %vm846, %v1647, %v1643
        %s1651 = scalar_lea.vmem %s3, 80
        %v1652 = vld [vmem:[%s1651] sm:$0xf]
        %1654 = vset.pattern.permute.xlu0 0
        %1655 = vperm.xlu0 %1654, %v1652
        %v1656 = vpop.permute.xlu0 %1655
        %v1658 = vperm.slane %v1649, 0
        %v1659 = vperm.slane %v1648, 0
        %v1660 = vperm.slane %v1650, 0
        %v1661 = vmul.f32 %v1656, %v1658
        %v1662 = vmul.f32 %v1656, %v1659
        %v1663 = vmul.f32 %v1656, %v1660
        %v1664 = vadd.f32 %v1639, %v1661
        %v1665 = vadd.f32 %v1640, %v1662
        %v1666 = vadd.f32 %v1641, %v1663
        %s1667 = scalar_lea.vmem %s3, 84
        %v1668 = vld [vmem:[%s1667] sm:$0xf]
        %1670 = vset.pattern.permute.xlu0 0
        %1671 = vperm.xlu0 %1670, %v1668
        %v1672 = vpop.permute.xlu0 %1671
        %v1674 = vperm.slane %v1649, 1
        %v1675 = vperm.slane %v1648, 1
        %v1676 = vperm.slane %v1650, 1
        %v1677 = vmul.f32 %v1672, %v1674
        %v1678 = vmul.f32 %v1672, %v1675
        %v1679 = vmul.f32 %v1672, %v1676
        %v1680 = vadd.f32 %v1664, %v1677
        %v1681 = vadd.f32 %v1665, %v1678
        %v1682 = vadd.f32 %v1666, %v1679
        %s1683 = scalar_lea.vmem %s3, 88
        %v1684 = vld [vmem:[%s1683] sm:$0xf]
        %1686 = vset.pattern.permute.xlu0 0
        %1687 = vperm.xlu0 %1686, %v1684
        %v1688 = vpop.permute.xlu0 %1687
        %v1690 = vperm.slane %v1649, 2
        %v1691 = vperm.slane %v1648, 2
        %v1692 = vperm.slane %v1650, 2
        %v1693 = vmul.f32 %v1688, %v1690
        %v1694 = vmul.f32 %v1688, %v1691
        %v1695 = vmul.f32 %v1688, %v1692
        %v1696 = vadd.f32 %v1680, %v1693
        %v1697 = vadd.f32 %v1681, %v1694
        %v1698 = vadd.f32 %v1682, %v1695
        %s1699 = scalar_lea.vmem %s3, 92
        %v1700 = vld [vmem:[%s1699] sm:$0xf]
        %1702 = vset.pattern.permute.xlu0 0
        %1703 = vperm.xlu0 %1702, %v1700
        %v1704 = vpop.permute.xlu0 %1703
        %v1706 = vperm.slane %v1649, 3
        %v1707 = vperm.slane %v1648, 3
        %v1708 = vperm.slane %v1650, 3
        %v1709 = vmul.f32 %v1704, %v1706
        %v1710 = vmul.f32 %v1704, %v1707
        %v1711 = vmul.f32 %v1704, %v1708
        %v1712 = vadd.f32 %v1696, %v1709
        %v1713 = vadd.f32 %v1697, %v1710
        %v1714 = vadd.f32 %v1698, %v1711
        %1715 = vrot.lane.b32.xlu0 %v1284, 111
        %v1716 = vpop.permute.xlu0 %1715
        %1717 = vrot.lane.b32.xlu0 %v1285, 111
        %v1718 = vpop.permute.xlu0 %1717
        %1719 = vrot.lane.b32.xlu0 %v1286, 111
        %v1720 = vpop.permute.xlu0 %1719
        %v1721 = vsel %vm929, %v1718, %v1720
        %v1722 = vsel %vm929, %v1716, %v1718
        %v1723 = vsel %vm929, %v1720, %v1716
        %s1724 = scalar_lea.vmem %s3, 96
        %v1725 = vld [vmem:[%s1724] sm:$0xf]
        %1727 = vset.pattern.permute.xlu0 0
        %1728 = vperm.xlu0 %1727, %v1725
        %v1729 = vpop.permute.xlu0 %1728
        %v1731 = vperm.slane %v1722, 0
        %v1732 = vperm.slane %v1721, 0
        %v1733 = vperm.slane %v1723, 0
        %v1734 = vmul.f32 %v1729, %v1731
        %v1735 = vmul.f32 %v1729, %v1732
        %v1736 = vmul.f32 %v1729, %v1733
        %v1737 = vadd.f32 %v1712, %v1734
        %v1738 = vadd.f32 %v1713, %v1735
        %v1739 = vadd.f32 %v1714, %v1736
        %s1740 = scalar_lea.vmem %s3, 100
        %v1741 = vld [vmem:[%s1740] sm:$0xf]
        %1743 = vset.pattern.permute.xlu0 0
        %1744 = vperm.xlu0 %1743, %v1741
        %v1745 = vpop.permute.xlu0 %1744
        %v1747 = vperm.slane %v1722, 1
        %v1748 = vperm.slane %v1721, 1
        %v1749 = vperm.slane %v1723, 1
        %v1750 = vmul.f32 %v1745, %v1747
        %v1751 = vmul.f32 %v1745, %v1748
        %v1752 = vmul.f32 %v1745, %v1749
        %v1753 = vadd.f32 %v1737, %v1750
        %v1754 = vadd.f32 %v1738, %v1751
        %v1755 = vadd.f32 %v1739, %v1752
        %s1756 = scalar_lea.vmem %s3, 104
        %v1757 = vld [vmem:[%s1756] sm:$0xf]
        %1759 = vset.pattern.permute.xlu0 0
        %1760 = vperm.xlu0 %1759, %v1757
        %v1761 = vpop.permute.xlu0 %1760
        %v1763 = vperm.slane %v1722, 2
        %v1764 = vperm.slane %v1721, 2
        %v1765 = vperm.slane %v1723, 2
        %v1766 = vmul.f32 %v1761, %v1763
        %v1767 = vmul.f32 %v1761, %v1764
        %v1768 = vmul.f32 %v1761, %v1765
        %v1769 = vadd.f32 %v1753, %v1766
        %v1770 = vadd.f32 %v1754, %v1767
        %v1771 = vadd.f32 %v1755, %v1768
        %s1772 = scalar_lea.vmem %s3, 108
        %v1773 = vld [vmem:[%s1772] sm:$0xf]
        %1775 = vset.pattern.permute.xlu0 0
        %1776 = vperm.xlu0 %1775, %v1773
        %v1777 = vpop.permute.xlu0 %1776
        %v1779 = vperm.slane %v1722, 3
        %v1780 = vperm.slane %v1721, 3
        %v1781 = vperm.slane %v1723, 3
        %v1782 = vmul.f32 %v1777, %v1779
        %v1783 = vmul.f32 %v1777, %v1780
        %v1784 = vmul.f32 %v1777, %v1781
        %v1785 = vadd.f32 %v1769, %v1782
        %v1786 = vadd.f32 %v1770, %v1783
        %v1787 = vadd.f32 %v1771, %v1784
        %1788 = vrot.lane.b32.xlu0 %v1284, 110
        %v1789 = vpop.permute.xlu0 %1788
        %1790 = vrot.lane.b32.xlu0 %v1285, 110
        %v1791 = vpop.permute.xlu0 %1790
        %1792 = vrot.lane.b32.xlu0 %v1286, 110
        %v1793 = vpop.permute.xlu0 %1792
        %v1794 = vsel %vm1012, %v1791, %v1793
        %v1795 = vsel %vm1012, %v1789, %v1791
        %v1796 = vsel %vm1012, %v1793, %v1789
        %s1797 = scalar_lea.vmem %s3, 112
        %v1798 = vld [vmem:[%s1797] sm:$0xf]
        %1800 = vset.pattern.permute.xlu0 0
        %1801 = vperm.xlu0 %1800, %v1798
        %v1802 = vpop.permute.xlu0 %1801
        %v1804 = vperm.slane %v1795, 0
        %v1805 = vperm.slane %v1794, 0
        %v1806 = vperm.slane %v1796, 0
        %v1807 = vmul.f32 %v1802, %v1804
        %v1808 = vmul.f32 %v1802, %v1805
        %v1809 = vmul.f32 %v1802, %v1806
        %v1810 = vadd.f32 %v1785, %v1807
        %v1811 = vadd.f32 %v1786, %v1808
        %v1812 = vadd.f32 %v1787, %v1809
        %s1813 = scalar_lea.vmem %s3, 116
        %v1814 = vld [vmem:[%s1813] sm:$0xf]
        %1816 = vset.pattern.permute.xlu0 0
        %1817 = vperm.xlu0 %1816, %v1814
        %v1818 = vpop.permute.xlu0 %1817
        %v1820 = vperm.slane %v1795, 1
        %v1821 = vperm.slane %v1794, 1
        %v1822 = vperm.slane %v1796, 1
        %v1823 = vmul.f32 %v1818, %v1820
        %v1824 = vmul.f32 %v1818, %v1821
        %v1825 = vmul.f32 %v1818, %v1822
        %v1826 = vadd.f32 %v1810, %v1823
        %v1827 = vadd.f32 %v1811, %v1824
        %v1828 = vadd.f32 %v1812, %v1825
        %s1829 = scalar_lea.vmem %s3, 120
        %v1830 = vld [vmem:[%s1829] sm:$0xf]
        %1832 = vset.pattern.permute.xlu0 0
        %1833 = vperm.xlu0 %1832, %v1830
        %v1834 = vpop.permute.xlu0 %1833
        %v1836 = vperm.slane %v1795, 2
        %v1837 = vperm.slane %v1794, 2
        %v1838 = vperm.slane %v1796, 2
        %v1839 = vmul.f32 %v1834, %v1836
        %v1840 = vmul.f32 %v1834, %v1837
        %v1841 = vmul.f32 %v1834, %v1838
        %v1842 = vadd.f32 %v1826, %v1839
        %v1843 = vadd.f32 %v1827, %v1840
        %v1844 = vadd.f32 %v1828, %v1841
        %s1845 = scalar_lea.vmem %s3, 124
        %v1846 = vld [vmem:[%s1845] sm:$0xf]
        %1848 = vset.pattern.permute.xlu0 0
        %1849 = vperm.xlu0 %1848, %v1846
        %v1850 = vpop.permute.xlu0 %1849
        %v1852 = vperm.slane %v1795, 3
        %v1853 = vperm.slane %v1794, 3
        %v1854 = vperm.slane %v1796, 3
        %v1855 = vmul.f32 %v1850, %v1852
        %v1856 = vmul.f32 %v1850, %v1853
        %v1857 = vmul.f32 %v1850, %v1854
        %v1858 = vadd.f32 %v1842, %v1855
        %v1859 = vadd.f32 %v1843, %v1856
        %v1860 = vadd.f32 %v1844, %v1857
        %1861 = vrot.lane.b32.xlu0 %v1284, 109
        %v1862 = vpop.permute.xlu0 %1861
        %1863 = vrot.lane.b32.xlu0 %v1285, 109
        %v1864 = vpop.permute.xlu0 %1863
        %1865 = vrot.lane.b32.xlu0 %v1286, 109
        %v1866 = vpop.permute.xlu0 %1865
        %v1867 = vsel %vm1095, %v1864, %v1866
        %v1868 = vsel %vm1095, %v1862, %v1864
        %v1869 = vsel %vm1095, %v1866, %v1862
        %s1870 = scalar_lea.vmem %s3, 128
        %v1871 = vld [vmem:[%s1870] sm:$0xf]
        %1873 = vset.pattern.permute.xlu0 0
        %1874 = vperm.xlu0 %1873, %v1871
        %v1875 = vpop.permute.xlu0 %1874
        %v1877 = vperm.slane %v1868, 0
        %v1878 = vperm.slane %v1867, 0
        %v1879 = vperm.slane %v1869, 0
        %v1880 = vmul.f32 %v1875, %v1877
        %v1881 = vmul.f32 %v1875, %v1878
        %v1882 = vmul.f32 %v1875, %v1879
        %v1883 = vadd.f32 %v1858, %v1880
        %v1884 = vadd.f32 %v1859, %v1881
        %v1885 = vadd.f32 %v1860, %v1882
        %s1886 = scalar_lea.vmem %s3, 132
        %v1887 = vld [vmem:[%s1886] sm:$0xf]
        %1889 = vset.pattern.permute.xlu0 0
        %1890 = vperm.xlu0 %1889, %v1887
        %v1891 = vpop.permute.xlu0 %1890
        %v1893 = vperm.slane %v1868, 1
        %v1894 = vperm.slane %v1867, 1
        %v1895 = vperm.slane %v1869, 1
        %v1896 = vmul.f32 %v1891, %v1893
        %v1897 = vmul.f32 %v1891, %v1894
        %v1898 = vmul.f32 %v1891, %v1895
        %v1899 = vadd.f32 %v1883, %v1896
        %v1900 = vadd.f32 %v1884, %v1897
        %v1901 = vadd.f32 %v1885, %v1898
        %s1902 = scalar_lea.vmem %s3, 136
        %v1903 = vld [vmem:[%s1902] sm:$0xf]
        %1905 = vset.pattern.permute.xlu0 0
        %1906 = vperm.xlu0 %1905, %v1903
        %v1907 = vpop.permute.xlu0 %1906
        %v1909 = vperm.slane %v1868, 2
        %v1910 = vperm.slane %v1867, 2
        %v1911 = vperm.slane %v1869, 2
        %v1912 = vmul.f32 %v1907, %v1909
        %v1913 = vmul.f32 %v1907, %v1910
        %v1914 = vmul.f32 %v1907, %v1911
        %v1915 = vadd.f32 %v1899, %v1912
        %v1916 = vadd.f32 %v1900, %v1913
        %v1917 = vadd.f32 %v1901, %v1914
        %s1918 = scalar_lea.vmem %s3, 140
        %v1919 = vld [vmem:[%s1918] sm:$0xf]
        %1921 = vset.pattern.permute.xlu0 0
        %1922 = vperm.xlu0 %1921, %v1919
        %v1923 = vpop.permute.xlu0 %1922
        %v1925 = vperm.slane %v1868, 3
        %v1926 = vperm.slane %v1867, 3
        %v1927 = vperm.slane %v1869, 3
        %v1928 = vmul.f32 %v1923, %v1925
        %v1929 = vmul.f32 %v1923, %v1926
        %v1930 = vmul.f32 %v1923, %v1927
        %v1931 = vadd.f32 %v1915, %v1928
        %v1932 = vadd.f32 %v1916, %v1929
        %v1933 = vadd.f32 %v1917, %v1930
        %v1934 = vmul.f32 %v1931, %v1164
        %v1935 = vmul.f32 %v1932, %v1165
        %v1936 = vmul.f32 %v1933, %v1166
        %v1937 = vsel %vm255, %v1934, 0.0
        %v1938 = vsel %vm255, %v1935, 0.0
        %v1939 = vadd.f32 %v1937, %v1938
        %v1940 = vsel %vm255, %v1936, 0.0
        %v1941 = vadd.f32 %v1939, %v1940
        %1942 = vadd.xlane.f32.xlu0 %v1941
        %v1943 = vpop.xlane.xlu0 %1942
        %v1944 = vmul.f32 %v1943, 0.00390625
        %v1945 = vsub.f32 %v1931, %v1944
        %v1946 = vsub.f32 %v1932, %v1944
        %v1947 = vsub.f32 %v1933, %v1944
        %v1948 = vmul.f32 %v1945, %v1945
        %v1949 = vmul.f32 %v1946, %v1946
        %v1950 = vmul.f32 %v1947, %v1947
        %v1951 = vmul.f32 %v1948, %v1164
        %v1952 = vmul.f32 %v1949, %v1165
        %v1953 = vmul.f32 %v1950, %v1166
        %v1954 = vsel %vm255, %v1951, 0.0
        %v1955 = vsel %vm255, %v1952, 0.0
        %v1956 = vadd.f32 %v1954, %v1955
        %v1957 = vsel %vm255, %v1953, 0.0
        %v1958 = vadd.f32 %v1956, %v1957
        %1959 = vadd.xlane.f32.xlu0 %v1958
        %v1960 = vpop.xlane.xlu0 %1959
        %v1961 = vmul.f32 %v1960, 0.00390625
        %v1962 = vadd.f32 %v1961, 1e-05
        %v1963 = vrsqrt.pop %v1962
        %v1964 = vmul.f32 %v1963, %v1962
        %v1965 = vmul.f32 %v1964, %v1963
        %v1966 = vmul.f32 0.5, %v1965
        %v1967 = vsub.f32 1.5, %v1966
        %v1968 = vmul.f32 %v1963, %v1967
        %vm1969 = vweird.f32 %v1962
        %vm1970 = vweird.f32 %v1963
        %vm1971 = vmor %vm1969, %vm1970
        %v1972 = vsel %vm1971, %v1963, %v1968
        %v1973 = vmul.f32 %v1945, %v1972
        %v1974 = vmul.f32 %v1946, %v1972
        %v1975 = vmul.f32 %v1947, %v1972
        %v1978 = vrot.slane %v1974, 4
        %v1979 = vsel %vm255, %v1973, %v1978
        %v1981 = vadd.f32 %v196, %v1979
        %v1982 = vadd.f32 %v197, %v1975
        %1983 = vst [vmem:[%s190] sm:$0xff] %v1981
        %1984 = vst [vmem:[%s190 + $0x8] sm:$0xf] %v1982
        %s1985 = sand.u32 %s115, 1
        %s1986 = scalar_lea.sflag [#allocation3], %s1985
        %s1987 = sand.u32 %s115, 1
        %s1988 = smul.addr %s1987, 12
        %s1989 = scalar_lea.vmem [#allocation2], %s1988
        // Predicated region
        $region37: #{tpu_custom_call.1} parent=35 // pred_check
          %p1990 = pneg %p125
        $region38: #{tpu_custom_call.1} parent=35 // pred_check_branch
          %1992 = sbr.rel (%p1990) target = $region40
        $region39: #{tpu_custom_call.1} parent=35 // pred_region
          %1994 = vsyncadd %s1986, 0
          %s1995 = smul.addr %s18, 3
          %s1996 = smul.addr %s1995, 4
          %s1997 = scalar_lea.hbm %s4, %s1996
          %s1999 = sshll.u32 %s1989, 4
          %s2000 = int_to_ptr.vmem [resolvable:$true] %s1999
          %s2001 = sshll.u32 %s1997, 4
          %s2002 = int_to_ptr.hbm [resolvable:$true] %s2001
          %2004 = dma.vmem_to_hbm [thread:$0]  %s2000, 192, %s2002, %s1986
        $region40: #{tpu_custom_call.1} parent=35 // pred_fallthru
          _
      $region36: #{tpu_custom_call.1} parent=5 // pred_fallthru
        _
      %p2005 = scmp.le.s32.totalorder 2, %s13
      // Predicated region
      $region41: #{tpu_custom_call.1} parent=5 // pred_check
        %p2006 = pneg %p2005
      $region42: #{tpu_custom_call.1} parent=5 // pred_check_branch
        %2008 = sbr.rel (%p2006) target = $region44
      $region43: #{tpu_custom_call.1} parent=5 // pred_region
        %s2009 = ssub.s32 %s13, 2
        // Predicated region
        $region45: #{tpu_custom_call.1} parent=43 // pred_check
          %p2010 = pneg %p131
        $region46: #{tpu_custom_call.1} parent=43 // pred_check_branch
          %2012 = sbr.rel (%p2010) target = $region48
        $region47: #{tpu_custom_call.1} parent=43 // pred_region
          %s2013 = sand.u32 %s116, 1
          %s2014 = scalar_lea.sflag [#allocation3], %s2013
          %s2015 = sand.u32 %s116, 1
          %s2016 = smul.addr %s2015, 12
          %s2017 = scalar_lea.vmem [#allocation2], %s2016
          %2019 = dma.done %s2014, 192
        $region48: #{tpu_custom_call.1} parent=43 // pred_fallthru
          _
      $region44: #{tpu_custom_call.1} parent=5 // pred_fallthru
        _
    $region6: #{tpu_custom_call.1} parent=1 // loop_footer
      %s17 = sadd.s32 1, %s13
    $region7: #{tpu_custom_call.1} parent=1 // loop_footer_branch
      %12 = sbr.rel target = $region3
    $region8: #{tpu_custom_call.1} parent=1 // loop_exit
      _
    %2020 = vsyncpa [#allocation3], 1
    %s2021 = scalar_lea.sflag [#allocation3], 1
    %2022 = vsyncpa %s2021, 1

</llo_original>
